<compile_context>
chip_gen: v7x
topology: tpu7x:2x2x1
jax: 0.10.0
libtpu: 0.0.40
codegen_flags: <defaults>
</compile_context>

<pallas_src>
import functools

import jax
import jax.numpy as jnp
from jax.experimental import pallas as pl
from jax.experimental.pallas import tpu as pltpu

INPUT_SIZE = 784
HIDDEN_SIZE = 500
NUM_CLASSES = 10

HIDDEN_PAD = 512   # next multiple of 128
OUT_PAD = 128      # lane-dense output slab; real logits = first 10 columns


def _round_up(x, m):
    return ((x + m - 1) // m) * m


def mlp_kernel(x_ref, w1_ref, b1_ref, w2_ref, b2_ref, o_ref):
    # Cast x -> bf16 in-kernel (VPU work hidden under the MXU) instead of a
    # separate wrapper-side XLA cast pass over all of x in HBM.
    x = x_ref[...].astype(jnp.bfloat16)
    # Layer 1: (TB,784)bf16 @ (784,512)bf16 -> f32 accumulation on the MXU.
    h = jnp.dot(x, w1_ref[...], preferred_element_type=jnp.float32)
    # Bias + ReLU in f32 on the VPU, then keep the (TB,512) activation in bf16
    # so its VMEM round-trip is half the bytes and it feeds the MXU directly.
    h = jnp.maximum(h + b1_ref[...], 0.0).astype(jnp.bfloat16)
    # Layer 2: bf16 @ bf16 -> f32 accumulation; bias in f32; bf16 store.
    out = jnp.dot(h, w2_ref[...], preferred_element_type=jnp.float32)
    o_ref[...] = (out + b2_ref[...]).astype(o_ref.dtype)


def prepare_params(w1, b1, w2, b2):
    """Zero-pad (500->512 hidden, 10->128 classes) and cast weights to bf16.

    Padding is numerically exact: padded hidden units are ReLU(0+0)=0 and hit
    zero rows of W2; padded logit columns are sliced off after the kernel.
    Biases stay f32 since they are added to the f32 MXU accumulator.
    """
    w1p = jnp.zeros((INPUT_SIZE, HIDDEN_PAD), jnp.float32).at[:, :HIDDEN_SIZE].set(w1)
    b1p = jnp.zeros((1, HIDDEN_PAD), jnp.float32).at[:, :HIDDEN_SIZE].set(b1)
    w2p = jnp.zeros((HIDDEN_PAD, OUT_PAD), jnp.float32).at[:HIDDEN_SIZE, :NUM_CLASSES].set(w2)
    b2p = jnp.zeros((1, OUT_PAD), jnp.float32).at[:, :NUM_CLASSES].set(b2)
    return w1p.astype(jnp.bfloat16), b1p, w2p.astype(jnp.bfloat16), b2p


@functools.partial(jax.jit, static_argnames=("block_b",))
def neural_net_forward(x, w1p, b1p, w2p, b2p, *, block_b=1024):
    """x: (B, 784) f32; params from prepare_params(); returns (B, 10) f32 logits."""
    B = x.shape[0]
    # Batch tile: multiple of 8 sublanes, capped at block_b. Ragged last tile
    # is handled by Pallas partial blocks (no wrapper-side jnp.pad of x).
    tb = min(block_b, _round_up(B, 8))
    # For large batches force >=2 grid steps so the "parallel" batch axis can
    # actually split across v7x's two TensorCores (no-op on v5e/v6e; the extra
    # ~0.35 us grid step is negligible at these tile sizes).
    if B >= 512 and pl.cdiv(B, tb) < 2:
        tb = _round_up(pl.cdiv(B, 2), 8)
    grid = (pl.cdiv(B, tb),)

    # Weights/biases: constant block index across the grid -> stay VMEM-resident.
    resident = lambda shape: pl.BlockSpec(shape, lambda i: (0, 0))

    flops = 2 * B * (INPUT_SIZE * HIDDEN_PAD + HIDDEN_PAD * OUT_PAD)
    bytes_accessed = (x.size * 4 + w1p.size * 2 + w2p.size * 2
                      + b1p.size * 4 + b2p.size * 4 + B * OUT_PAD * 2)

    out = pl.pallas_call(
        mlp_kernel,
        out_shape=jax.ShapeDtypeStruct((B, OUT_PAD), jnp.bfloat16),
        grid=grid,
        in_specs=[
            pl.BlockSpec((tb, INPUT_SIZE), lambda i: (i, 0)),   # f32 x tiles pipeline
            resident((INPUT_SIZE, HIDDEN_PAD)),                 # W1 (bf16), VMEM-resident
            resident((1, HIDDEN_PAD)),                          # b1 (f32)
            resident((HIDDEN_PAD, OUT_PAD)),                    # W2 (bf16)
            resident((1, OUT_PAD)),                             # b2 (f32)
        ],
        out_specs=pl.BlockSpec((tb, OUT_PAD), lambda i: (i, 0)),
        compiler_params=pltpu.CompilerParams(
            dimension_semantics=("parallel",),   # batch tiles are independent
        ),
        cost_estimate=pl.CostEstimate(
            flops=flops, transcendentals=0, bytes_accessed=bytes_accessed),
    )(x, w1p, b1p, w2p, b2p)

    # Slice off the padded logit columns; return f32 like the PyTorch module.
    return out[:, :NUM_CLASSES].astype(jnp.float32)


def init_params(key):
    # Deterministic init mimicking PyTorch's default Linear init
    # (uniform in [-1/sqrt(fan_in), 1/sqrt(fan_in)]).
    k1, k2, k3, k4 = jax.random.split(key, 4)
    lim1 = 1.0 / jnp.sqrt(jnp.float32(INPUT_SIZE))
    lim2 = 1.0 / jnp.sqrt(jnp.float32(HIDDEN_SIZE))
    # Stored as (in, out): transpose of the PyTorch (out, in) weight layout.
    w1 = jax.random.uniform(k1, (INPUT_SIZE, HIDDEN_SIZE), jnp.float32, -lim1, lim1)
    b1 = jax.random.uniform(k2, (1, HIDDEN_SIZE), jnp.float32, -lim1, lim1)
    w2 = jax.random.uniform(k3, (HIDDEN_SIZE, NUM_CLASSES), jnp.float32, -lim2, lim2)
    b2 = jax.random.uniform(k4, (1, NUM_CLASSES), jnp.float32, -lim2, lim2)
    return w1, b1, w2, b2


if __name__ == "__main__":
    key = jax.random.PRNGKey(0)
    k_params, k_x = jax.random.split(key)
    w1, b1, w2, b2 = init_params(k_params)
    w1p, b1p, w2p, b2p = prepare_params(w1, b1, w2, b2)

    batch = 8
    x = jax.random.normal(k_x, (batch, INPUT_SIZE), jnp.float32)

    out = neural_net_forward(x, w1p, b1p, w2p, b2p)
    out = jax.block_until_ready(out)

    # Pure-JAX f32 reference of the same forward; loose tolerance for the bf16
    # operands / bf16 output slab (accumulation is still f32 on the MXU).
    ref = jnp.maximum(x @ w1 + b1, 0.0) @ w2 + b2
    assert out.shape == (batch, NUM_CLASSES)
    assert jnp.allclose(out, ref, atol=2e-2, rtol=2e-2), float(jnp.max(jnp.abs(out - ref)))

    print("KERNEL_OK")
</pallas_src>

<mosaic_0001>
module attributes {stable_mosaic.version = 11 : i64} {
  func.func @mlp_kernel(%arg0: i32, %arg1: memref<8x784xf32, #tpu.memory_space<vmem>>, %arg2: memref<784x512xbf16, #tpu.memory_space<vmem>>, %arg3: memref<1x512xf32, #tpu.memory_space<vmem>>, %arg4: memref<512x128xbf16, #tpu.memory_space<vmem>>, %arg5: memref<1x128xf32, #tpu.memory_space<vmem>>, %arg6: memref<8x128xbf16, #tpu.memory_space<vmem>>) attributes {dimension_semantics = [#tpu.dimension_semantics<parallel>], iteration_bounds = array<i64: 1>, scalar_prefetch = 0 : i64, scratch_operands = 0 : i64, tpu.core_type = #tpu.core_type<tc>, window_params = [{transform_indices = @transform_0, window_bounds = array<i64: 8, 784>}, {pipeline_mode = #tpu.pipeline_mode<synchronous>, transform_indices = @transform_1, window_bounds = array<i64: 784, 512>}, {pipeline_mode = #tpu.pipeline_mode<synchronous>, transform_indices = @transform_2, window_bounds = array<i64: 1, 512>}, {pipeline_mode = #tpu.pipeline_mode<synchronous>, transform_indices = @transform_3, window_bounds = array<i64: 512, 128>}, {pipeline_mode = #tpu.pipeline_mode<synchronous>, transform_indices = @transform_4, window_bounds = array<i64: 1, 128>}, {transform_indices = @transform_5, window_bounds = array<i64: 8, 128>}]} {
    %c0 = arith.constant 0 : index
    %c0_0 = arith.constant 0 : index
    %0 = vector.load %arg1[%c0, %c0_0] : memref<8x784xf32, #tpu.memory_space<vmem>>, vector<8x784xf32>
    %1 = arith.truncf %0 : vector<8x784xf32> to vector<8x784xbf16>
    %c0_1 = arith.constant 0 : index
    %c0_2 = arith.constant 0 : index
    %2 = vector.load %arg2[%c0_1, %c0_2] : memref<784x512xbf16, #tpu.memory_space<vmem>>, vector<784x512xbf16>
    %cst = arith.constant dense<0.000000e+00> : vector<8x512xf32>
    %3 = tpu.matmul %1, %2, %cst {dimension_numbers = #tpu.dot_dimension_numbers<[1], [0], [0], [1], [0, 0, 1, 1], [], []>} : vector<8x784xbf16>, vector<784x512xbf16>, vector<8x512xf32> -> vector<8x512xf32>
    %c0_3 = arith.constant 0 : index
    %c0_4 = arith.constant 0 : index
    %4 = vector.load %arg3[%c0_3, %c0_4] : memref<1x512xf32, #tpu.memory_space<vmem>>, vector<1x512xf32>
    %5 = vector.broadcast %4 : vector<1x512xf32> to vector<8x512xf32>
    %6 = arith.addf %3, %5 : vector<8x512xf32>
    %cst_5 = arith.constant 0.000000e+00 : f32
    %7 = vector.broadcast %cst_5 : f32 to vector<8x512xf32>
    %8 = arith.maximumf %6, %7 : vector<8x512xf32>
    %9 = arith.truncf %8 : vector<8x512xf32> to vector<8x512xbf16>
    %c0_6 = arith.constant 0 : index
    %c0_7 = arith.constant 0 : index
    %10 = vector.load %arg4[%c0_6, %c0_7] : memref<512x128xbf16, #tpu.memory_space<vmem>>, vector<512x128xbf16>
    %cst_8 = arith.constant dense<0.000000e+00> : vector<8x128xf32>
    %11 = tpu.matmul %9, %10, %cst_8 {dimension_numbers = #tpu.dot_dimension_numbers<[1], [0], [0], [1], [0, 0, 1, 1], [], []>} : vector<8x512xbf16>, vector<512x128xbf16>, vector<8x128xf32> -> vector<8x128xf32>
    %c0_9 = arith.constant 0 : index
    %c0_10 = arith.constant 0 : index
    %12 = vector.load %arg5[%c0_9, %c0_10] : memref<1x128xf32, #tpu.memory_space<vmem>>, vector<1x128xf32>
    %13 = vector.broadcast %12 : vector<1x128xf32> to vector<8x128xf32>
    %14 = arith.addf %11, %13 : vector<8x128xf32>
    %15 = arith.truncf %14 : vector<8x128xf32> to vector<8x128xbf16>
    %c0_11 = arith.constant 0 : index
    %c0_12 = arith.constant 0 : index
    %16 = vector.load %arg6[%c0_11, %c0_12] : memref<8x128xbf16, #tpu.memory_space<vmem>>, vector<8x128xbf16>
    tpu.vector_store %arg6[%c0_11, %c0_12], %15 {strides = array<i32>} : memref<8x128xbf16, #tpu.memory_space<vmem>>, vector<8x128xbf16>,
    return
  }
  func.func @transform_0(%arg0: i32) -> (i32, i32) {
    %c0_i32 = arith.constant 0 : i32
    %c0_i32_0 = arith.constant 0 : i32
    return %arg0, %c0_i32 : i32, i32
  }
  func.func @transform_1(%arg0: i32) -> (i32, i32) {
    %c0_i32 = arith.constant 0 : i32
    %c0_i32_0 = arith.constant 0 : i32
    %c0_i32_1 = arith.constant 0 : i32
    return %c0_i32, %c0_i32_0 : i32, i32
  }
  func.func @transform_2(%arg0: i32) -> (i32, i32) {
    %c0_i32 = arith.constant 0 : i32
    %c0_i32_0 = arith.constant 0 : i32
    %c0_i32_1 = arith.constant 0 : i32
    return %c0_i32, %c0_i32_0 : i32, i32
  }
  func.func @transform_3(%arg0: i32) -> (i32, i32) {
    %c0_i32 = arith.constant 0 : i32
    %c0_i32_0 = arith.constant 0 : i32
    %c0_i32_1 = arith.constant 0 : i32
    return %c0_i32, %c0_i32_0 : i32, i32
  }
  func.func @transform_4(%arg0: i32) -> (i32, i32) {
    %c0_i32 = arith.constant 0 : i32
    %c0_i32_0 = arith.constant 0 : i32
    %c0_i32_1 = arith.constant 0 : i32
    return %c0_i32, %c0_i32_0 : i32, i32
  }
  func.func @transform_5(%arg0: i32) -> (i32, i32) {
    %c0_i32 = arith.constant 0 : i32
    %c0_i32_0 = arith.constant 0 : i32
    return %arg0, %c0_i32 : i32, i32
  }
}

</mosaic_0001>

<llo_original>
// kernel: neural_net_forward.1
$region0: #{neural_net_forward.1}
  #allocation0 [shape = 'u32[]', space=smem, size = 0x4, offset = 0x4, fixed_abs, tag = 'smem constant byte address 0x4 - core index']
  #allocation1 [shape = 'u32[144,128]{1,0:T(1,128)}', space=vmem, size = 0x12000, scoped, tag = 'internal scratch']
  %s0 = inlined_call_operand.hbm [shape: f32[8,784], index: 0, kind: input, shape index: {}]
  %s1 = inlined_call_operand.hbm [shape: bf16[784,512], index: 1, kind: input, shape index: {}]
  %s2 = inlined_call_operand.vmem [shape: f32[1,512], index: 2, kind: input, shape index: {}]
  %s3 = inlined_call_operand.hbm [shape: bf16[512,128], index: 3, kind: input, shape index: {}]
  %s4 = inlined_call_operand.vmem [shape: f32[1,128], index: 4, kind: input, shape index: {}]
  %s5 = inlined_call_operand.vmem [shape: bf16[8,128], index: 5, kind: output, shape index: {}]
  %s6 = sld [smem:[#allocation0]]
  $region42: #{neural_net_forward.1} parent=0
    _
  %s8 = ssub.s32 1, %s6
  %s9 = scalar_select 0, %s8, %s6
  $region1: #{neural_net_forward.1} parent=0
    #allocation2 [shape = 'u8[28672]{0}', space=vmem, size = 0x7000, scoped, tag = 'input window, operand 0, single buffered']
    #allocation3 [shape = 's32[1]{0}', space=sflag, size = 0x4, scoped, tag = 'scoped memory for neural_net_forward.1']
    #allocation4 [shape = 'u8[802816]{0}', space=vmem, size = 0xc4000, scoped, tag = 'input window, operand 1, single buffered']
    #allocation5 [shape = 's32[1]{0}', space=sflag, size = 0x4, scoped, tag = 'scoped memory for neural_net_forward.1']
    #allocation6 [shape = 'u8[131072]{0}', space=vmem, size = 0x20000, scoped, tag = 'input window, operand 3, single buffered']
    %10 = vsyncpa [#allocation3], 0
    %11 = vsyncpa [#allocation5], 0
    // Predicated region
    $region2: #{neural_net_forward.1} parent=1 // pred_check
      _
    $region3: #{neural_net_forward.1} parent=1 // pred_check_branch
      %13 = sbr.rel (0) target = $region5
    $region4: #{neural_net_forward.1} parent=1 // pred_region
      %s15 = ssub.s32 896, 896
      %16 = vsyncadd [#allocation3], %s15
      %s18 = sshll.u32 [#allocation2], 4
      %s19 = int_to_ptr.vmem [resolvable:$true] %s18
      %21 = dma.hbm_to_vmem [thread:$0]  %s0, 896, %s19, [#allocation3]
    $region5: #{neural_net_forward.1} parent=1 // pred_fallthru
      _
    // Predicated region
    $region6: #{neural_net_forward.1} parent=1 // pred_check
      _
    $region7: #{neural_net_forward.1} parent=1 // pred_check_branch
      %23 = sbr.rel (0) target = $region9
    $region8: #{neural_net_forward.1} parent=1 // pred_region
      %s25 = ssub.s32 25088, 25088
      %26 = vsyncadd [#allocation5], %s25
      %s27 = sshll.u32 [#allocation4], 4
      %s28 = int_to_ptr.vmem [resolvable:$true] %s27
      %33 = dma.hbm_to_vmem [thread:$0]  %s1, 25088, %s28, [#allocation5], 256, 256, 16
    $region9: #{neural_net_forward.1} parent=1 // pred_fallthru
      _
    // Predicated region
    $region10: #{neural_net_forward.1} parent=1 // pred_check
      _
    $region11: #{neural_net_forward.1} parent=1 // pred_check_branch
      %35 = sbr.rel (0) target = $region13
    $region12: #{neural_net_forward.1} parent=1 // pred_region
      _
    $region13: #{neural_net_forward.1} parent=1 // pred_fallthru
      _
    // Predicated region
    $region14: #{neural_net_forward.1} parent=1 // pred_check
      _
    $region15: #{neural_net_forward.1} parent=1 // pred_check_branch
      %37 = sbr.rel (0) target = $region17
    $region16: #{neural_net_forward.1} parent=1 // pred_region
      %s39 = ssub.s32 4096, 4096
      %40 = vsyncadd [#allocation5], %s39
      %s41 = sshll.u32 [#allocation6], 4
      %s42 = int_to_ptr.vmem [resolvable:$true] %s41
      %47 = dma.hbm_to_vmem [thread:$0]  %s3, 4096, %s42, [#allocation5], 64, 64, 4
    $region17: #{neural_net_forward.1} parent=1 // pred_fallthru
      _
    // Predicated region
    $region18: #{neural_net_forward.1} parent=1 // pred_check
      _
    $region19: #{neural_net_forward.1} parent=1 // pred_check_branch
      %49 = sbr.rel (0) target = $region21
    $region20: #{neural_net_forward.1} parent=1 // pred_region
      _
    $region21: #{neural_net_forward.1} parent=1 // pred_fallthru
      _
    // Predicated region
    $region22: #{neural_net_forward.1} parent=1 // pred_check
      _
    $region23: #{neural_net_forward.1} parent=1 // pred_check_branch
      %51 = sbr.rel (0) target = $region25
    $region24: #{neural_net_forward.1} parent=1 // pred_region
      %52 = dma.done [#allocation3], 896
    $region25: #{neural_net_forward.1} parent=1 // pred_fallthru
      _
    // Predicated region
    $region26: #{neural_net_forward.1} parent=1 // pred_check
      _
    $region27: #{neural_net_forward.1} parent=1 // pred_check_branch
      %54 = sbr.rel (0) target = $region29
    $region28: #{neural_net_forward.1} parent=1 // pred_region
      %55 = dma.done [#allocation5], 25088
    $region29: #{neural_net_forward.1} parent=1 // pred_fallthru
      _
    // Predicated region
    $region30: #{neural_net_forward.1} parent=1 // pred_check
      _
    $region31: #{neural_net_forward.1} parent=1 // pred_check_branch
      %57 = sbr.rel (0) target = $region33
    $region32: #{neural_net_forward.1} parent=1 // pred_region
      %58 = dma.done [#allocation5], 4096
    $region33: #{neural_net_forward.1} parent=1 // pred_fallthru
      _
    %v60 = vld [vmem:[#allocation2] sm:$0xff]
    %v61 = vld [vmem:[#allocation2 + $0x8] sm:$0xff]
    %v62 = vld [vmem:[#allocation2 + $0x10] sm:$0xff]
    %v63 = vld [vmem:[#allocation2 + $0x18] sm:$0xff]
    %v64 = vld [vmem:[#allocation2 + $0x20] sm:$0xff]
    %v65 = vld [vmem:[#allocation2 + $0x28] sm:$0xff]
    %v66 = vld [vmem:[#allocation2 + $0x30] sm:$0xff]
    %v67 = vpack.c.bf16 %v60, %v60
    %v68 = vpack.c.bf16 %v61, %v61
    %v69 = vpack.c.bf16 %v62, %v62
    %v70 = vpack.c.bf16 %v63, %v63
    %v71 = vpack.c.bf16 %v64, %v64
    %v72 = vpack.c.bf16 %v65, %v65
    %v73 = vpack.c.bf16 %v66, %v66
    %v74 = vld [vmem:[#allocation4] sm:$0xff]
    %v75 = vld [vmem:[#allocation4 + $0x8] sm:$0xff]
    %v76 = vld [vmem:[#allocation4 + $0x10] sm:$0xff]
    %v77 = vld [vmem:[#allocation4 + $0x18] sm:$0xff]
    %v78 = vld [vmem:[#allocation4 + $0x20] sm:$0xff]
    %v79 = vld [vmem:[#allocation4 + $0x28] sm:$0xff]
    %v80 = vld [vmem:[#allocation4 + $0x30] sm:$0xff]
    %v81 = vld [vmem:[#allocation4 + $0x38] sm:$0xff]
    %v82 = vld [vmem:[#allocation4 + $0x40] sm:$0xff]
    %v83 = vld [vmem:[#allocation4 + $0x48] sm:$0xff]
    %v84 = vld [vmem:[#allocation4 + $0x50] sm:$0xff]
    %v85 = vld [vmem:[#allocation4 + $0x58] sm:$0xff]
    %v86 = vld [vmem:[#allocation4 + $0x60] sm:$0xff]
    %v87 = vld [vmem:[#allocation4 + $0x68] sm:$0xff]
    %v88 = vld [vmem:[#allocation4 + $0x70] sm:$0xff]
    %v89 = vld [vmem:[#allocation4 + $0x78] sm:$0xff]
    %v90 = vld [vmem:[#allocation4 + $0x80] sm:$0xff]
    %v91 = vld [vmem:[#allocation4 + $0x88] sm:$0xff]
    %v92 = vld [vmem:[#allocation4 + $0x90] sm:$0xff]
    %v93 = vld [vmem:[#allocation4 + $0x98] sm:$0xff]
    %v94 = vld [vmem:[#allocation4 + $0xa0] sm:$0xff]
    %v95 = vld [vmem:[#allocation4 + $0xa8] sm:$0xff]
    %v96 = vld [vmem:[#allocation4 + $0xb0] sm:$0xff]
    %v97 = vld [vmem:[#allocation4 + $0xb8] sm:$0xff]
    %v98 = vld [vmem:[#allocation4 + $0xc0] sm:$0xff]
    %v99 = vld [vmem:[#allocation4 + $0xc8] sm:$0xff]
    %v100 = vld [vmem:[#allocation4 + $0xd0] sm:$0xff]
    %v101 = vld [vmem:[#allocation4 + $0xd8] sm:$0xff]
    %v102 = vld [vmem:[#allocation4 + $0xe0] sm:$0xff]
    %v103 = vld [vmem:[#allocation4 + $0xe8] sm:$0xff]
    %v104 = vld [vmem:[#allocation4 + $0xf0] sm:$0xff]
    %v105 = vld [vmem:[#allocation4 + $0xf8] sm:$0xff]
    %v106 = vld [vmem:[#allocation4 + $0x100] sm:$0xff]
    %v107 = vld [vmem:[#allocation4 + $0x108] sm:$0xff]
    %v108 = vld [vmem:[#allocation4 + $0x110] sm:$0xff]
    %v109 = vld [vmem:[#allocation4 + $0x118] sm:$0xff]
    %v110 = vld [vmem:[#allocation4 + $0x120] sm:$0xff]
    %v111 = vld [vmem:[#allocation4 + $0x128] sm:$0xff]
    %v112 = vld [vmem:[#allocation4 + $0x130] sm:$0xff]
    %v113 = vld [vmem:[#allocation4 + $0x138] sm:$0xff]
    %v114 = vld [vmem:[#allocation4 + $0x140] sm:$0xff]
    %v115 = vld [vmem:[#allocation4 + $0x148] sm:$0xff]
    %v116 = vld [vmem:[#allocation4 + $0x150] sm:$0xff]
    %v117 = vld [vmem:[#allocation4 + $0x158] sm:$0xff]
    %v118 = vld [vmem:[#allocation4 + $0x160] sm:$0xff]
    %v119 = vld [vmem:[#allocation4 + $0x168] sm:$0xff]
    %v120 = vld [vmem:[#allocation4 + $0x170] sm:$0xff]
    %v121 = vld [vmem:[#allocation4 + $0x178] sm:$0xff]
    %v122 = vld [vmem:[#allocation4 + $0x180] sm:$0xff]
    %v123 = vld [vmem:[#allocation4 + $0x188] sm:$0xff]
    %v124 = vld [vmem:[#allocation4 + $0x190] sm:$0xff]
    %v125 = vld [vmem:[#allocation4 + $0x198] sm:$0xff]
    %v126 = vld [vmem:[#allocation4 + $0x1a0] sm:$0xff]
    %v127 = vld [vmem:[#allocation4 + $0x1a8] sm:$0xff]
    %v128 = vld [vmem:[#allocation4 + $0x1b0] sm:$0xff]
    %v129 = vld [vmem:[#allocation4 + $0x1b8] sm:$0xff]
    %v130 = vld [vmem:[#allocation4 + $0x1c0] sm:$0xff]
    %v131 = vld [vmem:[#allocation4 + $0x1c8] sm:$0xff]
    %v132 = vld [vmem:[#allocation4 + $0x1d0] sm:$0xff]
    %v133 = vld [vmem:[#allocation4 + $0x1d8] sm:$0xff]
    %v134 = vld [vmem:[#allocation4 + $0x1e0] sm:$0xff]
    %v135 = vld [vmem:[#allocation4 + $0x1e8] sm:$0xff]
    %v136 = vld [vmem:[#allocation4 + $0x1f0] sm:$0xff]
    %v137 = vld [vmem:[#allocation4 + $0x1f8] sm:$0xff]
    %v138 = vld [vmem:[#allocation4 + $0x200] sm:$0xff]
    %v139 = vld [vmem:[#allocation4 + $0x208] sm:$0xff]
    %v140 = vld [vmem:[#allocation4 + $0x210] sm:$0xff]
    %v141 = vld [vmem:[#allocation4 + $0x218] sm:$0xff]
    %v142 = vld [vmem:[#allocation4 + $0x220] sm:$0xff]
    %v143 = vld [vmem:[#allocation4 + $0x228] sm:$0xff]
    %v144 = vld [vmem:[#allocation4 + $0x230] sm:$0xff]
    %v145 = vld [vmem:[#allocation4 + $0x238] sm:$0xff]
    %v146 = vld [vmem:[#allocation4 + $0x240] sm:$0xff]
    %v147 = vld [vmem:[#allocation4 + $0x248] sm:$0xff]
    %v148 = vld [vmem:[#allocation4 + $0x250] sm:$0xff]
    %v149 = vld [vmem:[#allocation4 + $0x258] sm:$0xff]
    %v150 = vld [vmem:[#allocation4 + $0x260] sm:$0xff]
    %v151 = vld [vmem:[#allocation4 + $0x268] sm:$0xff]
    %v152 = vld [vmem:[#allocation4 + $0x270] sm:$0xff]
    %v153 = vld [vmem:[#allocation4 + $0x278] sm:$0xff]
    %v154 = vld [vmem:[#allocation4 + $0x280] sm:$0xff]
    %v155 = vld [vmem:[#allocation4 + $0x288] sm:$0xff]
    %v156 = vld [vmem:[#allocation4 + $0x290] sm:$0xff]
    %v157 = vld [vmem:[#allocation4 + $0x298] sm:$0xff]
    %v158 = vld [vmem:[#allocation4 + $0x2a0] sm:$0xff]
    %v159 = vld [vmem:[#allocation4 + $0x2a8] sm:$0xff]
    %v160 = vld [vmem:[#allocation4 + $0x2b0] sm:$0xff]
    %v161 = vld [vmem:[#allocation4 + $0x2b8] sm:$0xff]
    %v162 = vld [vmem:[#allocation4 + $0x2c0] sm:$0xff]
    %v163 = vld [vmem:[#allocation4 + $0x2c8] sm:$0xff]
    %v164 = vld [vmem:[#allocation4 + $0x2d0] sm:$0xff]
    %v165 = vld [vmem:[#allocation4 + $0x2d8] sm:$0xff]
    %v166 = vld [vmem:[#allocation4 + $0x2e0] sm:$0xff]
    %v167 = vld [vmem:[#allocation4 + $0x2e8] sm:$0xff]
    %v168 = vld [vmem:[#allocation4 + $0x2f0] sm:$0xff]
    %v169 = vld [vmem:[#allocation4 + $0x2f8] sm:$0xff]
    %v170 = vld [vmem:[#allocation4 + $0x300] sm:$0xff]
    %v171 = vld [vmem:[#allocation4 + $0x308] sm:$0xff]
    %v172 = vld [vmem:[#allocation4 + $0x310] sm:$0xff]
    %v173 = vld [vmem:[#allocation4 + $0x318] sm:$0xff]
    %v174 = vld [vmem:[#allocation4 + $0x320] sm:$0xff]
    %v175 = vld [vmem:[#allocation4 + $0x328] sm:$0xff]
    %v176 = vld [vmem:[#allocation4 + $0x330] sm:$0xff]
    %v177 = vld [vmem:[#allocation4 + $0x338] sm:$0xff]
    %v178 = vld [vmem:[#allocation4 + $0x340] sm:$0xff]
    %v179 = vld [vmem:[#allocation4 + $0x348] sm:$0xff]
    %v180 = vld [vmem:[#allocation4 + $0x350] sm:$0xff]
    %v181 = vld [vmem:[#allocation4 + $0x358] sm:$0xff]
    %v182 = vld [vmem:[#allocation4 + $0x360] sm:$0xff]
    %v183 = vld [vmem:[#allocation4 + $0x368] sm:$0xff]
    %v184 = vld [vmem:[#allocation4 + $0x370] sm:$0xff]
    %v185 = vld [vmem:[#allocation4 + $0x378] sm:$0xff]
    %v186 = vld [vmem:[#allocation4 + $0x380] sm:$0xff]
    %v187 = vld [vmem:[#allocation4 + $0x388] sm:$0xff]
    %v188 = vld [vmem:[#allocation4 + $0x390] sm:$0xff]
    %v189 = vld [vmem:[#allocation4 + $0x398] sm:$0xff]
    %v190 = vld [vmem:[#allocation4 + $0x3a0] sm:$0xff]
    %v191 = vld [vmem:[#allocation4 + $0x3a8] sm:$0xff]
    %v192 = vld [vmem:[#allocation4 + $0x3b0] sm:$0xff]
    %v193 = vld [vmem:[#allocation4 + $0x3b8] sm:$0xff]
    %v194 = vld [vmem:[#allocation4 + $0x3c0] sm:$0xff]
    %v195 = vld [vmem:[#allocation4 + $0x3c8] sm:$0xff]
    %v196 = vld [vmem:[#allocation4 + $0x3d0] sm:$0xff]
    %v197 = vld [vmem:[#allocation4 + $0x3d8] sm:$0xff]
    %v198 = vld [vmem:[#allocation4 + $0x3e0] sm:$0xff]
    %v199 = vld [vmem:[#allocation4 + $0x3e8] sm:$0xff]
    %v200 = vld [vmem:[#allocation4 + $0x3f0] sm:$0xff]
    %v201 = vld [vmem:[#allocation4 + $0x3f8] sm:$0xff]
    %v202 = vld [vmem:[#allocation4 + $0x400] sm:$0xff]
    %v203 = vld [vmem:[#allocation4 + $0x408] sm:$0xff]
    %v204 = vld [vmem:[#allocation4 + $0x410] sm:$0xff]
    %v205 = vld [vmem:[#allocation4 + $0x418] sm:$0xff]
    %v206 = vld [vmem:[#allocation4 + $0x420] sm:$0xff]
    %v207 = vld [vmem:[#allocation4 + $0x428] sm:$0xff]
    %v208 = vld [vmem:[#allocation4 + $0x430] sm:$0xff]
    %v209 = vld [vmem:[#allocation4 + $0x438] sm:$0xff]
    %v210 = vld [vmem:[#allocation4 + $0x440] sm:$0xff]
    %v211 = vld [vmem:[#allocation4 + $0x448] sm:$0xff]
    %v212 = vld [vmem:[#allocation4 + $0x450] sm:$0xff]
    %v213 = vld [vmem:[#allocation4 + $0x458] sm:$0xff]
    %v214 = vld [vmem:[#allocation4 + $0x460] sm:$0xff]
    %v215 = vld [vmem:[#allocation4 + $0x468] sm:$0xff]
    %v216 = vld [vmem:[#allocation4 + $0x470] sm:$0xff]
    %v217 = vld [vmem:[#allocation4 + $0x478] sm:$0xff]
    %v218 = vld [vmem:[#allocation4 + $0x480] sm:$0xff]
    %v219 = vld [vmem:[#allocation4 + $0x488] sm:$0xff]
    %v220 = vld [vmem:[#allocation4 + $0x490] sm:$0xff]
    %v221 = vld [vmem:[#allocation4 + $0x498] sm:$0xff]
    %v222 = vld [vmem:[#allocation4 + $0x4a0] sm:$0xff]
    %v223 = vld [vmem:[#allocation4 + $0x4a8] sm:$0xff]
    %v224 = vld [vmem:[#allocation4 + $0x4b0] sm:$0xff]
    %v225 = vld [vmem:[#allocation4 + $0x4b8] sm:$0xff]
    %v226 = vld [vmem:[#allocation4 + $0x4c0] sm:$0xff]
    %v227 = vld [vmem:[#allocation4 + $0x4c8] sm:$0xff]
    %v228 = vld [vmem:[#allocation4 + $0x4d0] sm:$0xff]
    %v229 = vld [vmem:[#allocation4 + $0x4d8] sm:$0xff]
    %v230 = vld [vmem:[#allocation4 + $0x4e0] sm:$0xff]
    %v231 = vld [vmem:[#allocation4 + $0x4e8] sm:$0xff]
    %v232 = vld [vmem:[#allocation4 + $0x4f0] sm:$0xff]
    %v233 = vld [vmem:[#allocation4 + $0x4f8] sm:$0xff]
    %v234 = vld [vmem:[#allocation4 + $0x500] sm:$0xff]
    %v235 = vld [vmem:[#allocation4 + $0x508] sm:$0xff]
    %v236 = vld [vmem:[#allocation4 + $0x510] sm:$0xff]
    %v237 = vld [vmem:[#allocation4 + $0x518] sm:$0xff]
    %v238 = vld [vmem:[#allocation4 + $0x520] sm:$0xff]
    %v239 = vld [vmem:[#allocation4 + $0x528] sm:$0xff]
    %v240 = vld [vmem:[#allocation4 + $0x530] sm:$0xff]
    %v241 = vld [vmem:[#allocation4 + $0x538] sm:$0xff]
    %v242 = vld [vmem:[#allocation4 + $0x540] sm:$0xff]
    %v243 = vld [vmem:[#allocation4 + $0x548] sm:$0xff]
    %v244 = vld [vmem:[#allocation4 + $0x550] sm:$0xff]
    %v245 = vld [vmem:[#allocation4 + $0x558] sm:$0xff]
    %v246 = vld [vmem:[#allocation4 + $0x560] sm:$0xff]
    %v247 = vld [vmem:[#allocation4 + $0x568] sm:$0xff]
    %v248 = vld [vmem:[#allocation4 + $0x570] sm:$0xff]
    %v249 = vld [vmem:[#allocation4 + $0x578] sm:$0xff]
    %v250 = vld [vmem:[#allocation4 + $0x580] sm:$0xff]
    %v251 = vld [vmem:[#allocation4 + $0x588] sm:$0xff]
    %v252 = vld [vmem:[#allocation4 + $0x590] sm:$0xff]
    %v253 = vld [vmem:[#allocation4 + $0x598] sm:$0xff]
    %v254 = vld [vmem:[#allocation4 + $0x5a0] sm:$0xff]
    %v255 = vld [vmem:[#allocation4 + $0x5a8] sm:$0xff]
    %v256 = vld [vmem:[#allocation4 + $0x5b0] sm:$0xff]
    %v257 = vld [vmem:[#allocation4 + $0x5b8] sm:$0xff]
    %v258 = vld [vmem:[#allocation4 + $0x5c0] sm:$0xff]
    %v259 = vld [vmem:[#allocation4 + $0x5c8] sm:$0xff]
    %v260 = vld [vmem:[#allocation4 + $0x5d0] sm:$0xff]
    %v261 = vld [vmem:[#allocation4 + $0x5d8] sm:$0xff]
    %v262 = vld [vmem:[#allocation4 + $0x5e0] sm:$0xff]
    %v263 = vld [vmem:[#allocation4 + $0x5e8] sm:$0xff]
    %v264 = vld [vmem:[#allocation4 + $0x5f0] sm:$0xff]
    %v265 = vld [vmem:[#allocation4 + $0x5f8] sm:$0xff]
    %v266 = vld [vmem:[#allocation4 + $0x600] sm:$0xff]
    %v267 = vld [vmem:[#allocation4 + $0x608] sm:$0xff]
    %v268 = vld [vmem:[#allocation4 + $0x610] sm:$0xff]
    %v269 = vld [vmem:[#allocation4 + $0x618] sm:$0xff]
    %v270 = vld [vmem:[%s2] sm:$0xf]
    %v272 = vlaneseq
    %v273 = vshrl.u32 %v272, 7
    %v274 = vsub.s32 0, %v273
    %v275 = vrot.slane %v270, %v274
    %v276 = vlaneseq
    %v277 = vshrl.u32 %v276, 7
    %v278 = vsub.s32 1, %v277
    %v279 = vrot.slane %v270, %v278
    %v280 = vlaneseq
    %v281 = vshrl.u32 %v280, 7
    %v282 = vsub.s32 2, %v281
    %v283 = vrot.slane %v270, %v282
    %v284 = vlaneseq
    %v285 = vshrl.u32 %v284, 7
    %v286 = vsub.s32 3, %v285
    %v287 = vrot.slane %v270, %v286
    %v488 = vunpack.c.l.b16 %v74
    %v489 = vunpack.c.h.b16 %v74
    %v490 = vunpack.c.l.b16 %v75
    %v491 = vunpack.c.h.b16 %v75
    %v492 = vunpack.c.l.b16 %v76
    %v493 = vunpack.c.h.b16 %v76
    %v494 = vunpack.c.l.b16 %v77
    %v495 = vunpack.c.h.b16 %v77
    %v496 = vunpack.c.l.b16 %v78
    %v497 = vunpack.c.h.b16 %v78
    %v498 = vunpack.c.l.b16 %v79
    %v499 = vunpack.c.h.b16 %v79
    %v500 = vunpack.c.l.b16 %v80
    %v501 = vunpack.c.h.b16 %v80
    %v502 = vunpack.c.l.b16 %v81
    %v503 = vunpack.c.h.b16 %v81
    %v504 = vunpack.c.l.b16 %v82
    %v505 = vunpack.c.h.b16 %v82
    %v506 = vunpack.c.l.b16 %v83
    %v507 = vunpack.c.h.b16 %v83
    %v508 = vunpack.c.l.b16 %v84
    %v509 = vunpack.c.h.b16 %v84
    %v510 = vunpack.c.l.b16 %v85
    %v511 = vunpack.c.h.b16 %v85
    %v512 = vunpack.c.l.b16 %v86
    %v513 = vunpack.c.h.b16 %v86
    %v514 = vunpack.c.l.b16 %v87
    %v515 = vunpack.c.h.b16 %v87
    %v516 = vunpack.c.l.b16 %v88
    %v517 = vunpack.c.h.b16 %v88
    %v518 = vunpack.c.l.b16 %v89
    %v519 = vunpack.c.h.b16 %v89
    %v520 = vunpack.c.l.b16 %v90
    %v521 = vunpack.c.h.b16 %v90
    %v522 = vunpack.c.l.b16 %v91
    %v523 = vunpack.c.h.b16 %v91
    %v524 = vunpack.c.l.b16 %v92
    %v525 = vunpack.c.h.b16 %v92
    %v526 = vunpack.c.l.b16 %v93
    %v527 = vunpack.c.h.b16 %v93
    %v528 = vunpack.c.l.b16 %v94
    %v529 = vunpack.c.h.b16 %v94
    %v530 = vunpack.c.l.b16 %v95
    %v531 = vunpack.c.h.b16 %v95
    %v532 = vunpack.c.l.b16 %v96
    %v533 = vunpack.c.h.b16 %v96
    %v534 = vunpack.c.l.b16 %v97
    %v535 = vunpack.c.h.b16 %v97
    %v536 = vunpack.c.l.b16 %v98
    %v537 = vunpack.c.h.b16 %v98
    %v538 = vunpack.c.l.b16 %v99
    %v539 = vunpack.c.h.b16 %v99
    %v540 = vunpack.c.l.b16 %v100
    %v541 = vunpack.c.h.b16 %v100
    %v542 = vunpack.c.l.b16 %v101
    %v543 = vunpack.c.h.b16 %v101
    %v544 = vunpack.c.l.b16 %v102
    %v545 = vunpack.c.h.b16 %v102
    %v546 = vunpack.c.l.b16 %v103
    %v547 = vunpack.c.h.b16 %v103
    %v548 = vunpack.c.l.b16 %v104
    %v549 = vunpack.c.h.b16 %v104
    %v550 = vunpack.c.l.b16 %v105
    %v551 = vunpack.c.h.b16 %v105
    %v552 = vunpack.c.l.b16 %v106
    %v553 = vunpack.c.h.b16 %v106
    %v554 = vunpack.c.l.b16 %v107
    %v555 = vunpack.c.h.b16 %v107
    %v556 = vunpack.c.l.b16 %v108
    %v557 = vunpack.c.h.b16 %v108
    %v558 = vunpack.c.l.b16 %v109
    %v559 = vunpack.c.h.b16 %v109
    %v560 = vunpack.c.l.b16 %v110
    %v561 = vunpack.c.h.b16 %v110
    %v562 = vunpack.c.l.b16 %v111
    %v563 = vunpack.c.h.b16 %v111
    %v564 = vunpack.c.l.b16 %v112
    %v565 = vunpack.c.h.b16 %v112
    %v566 = vunpack.c.l.b16 %v113
    %v567 = vunpack.c.h.b16 %v113
    %v568 = vunpack.c.l.b16 %v114
    %v569 = vunpack.c.h.b16 %v114
    %v570 = vunpack.c.l.b16 %v115
    %v571 = vunpack.c.h.b16 %v115
    %v572 = vunpack.c.l.b16 %v116
    %v573 = vunpack.c.h.b16 %v116
    %v574 = vunpack.c.l.b16 %v117
    %v575 = vunpack.c.h.b16 %v117
    %v576 = vunpack.c.l.b16 %v118
    %v577 = vunpack.c.h.b16 %v118
    %v578 = vunpack.c.l.b16 %v119
    %v579 = vunpack.c.h.b16 %v119
    %v580 = vunpack.c.l.b16 %v120
    %v581 = vunpack.c.h.b16 %v120
    %v582 = vunpack.c.l.b16 %v121
    %v583 = vunpack.c.h.b16 %v121
    %v584 = vunpack.c.l.b16 %v122
    %v585 = vunpack.c.h.b16 %v122
    %v586 = vunpack.c.l.b16 %v123
    %v587 = vunpack.c.h.b16 %v123
    %v588 = vunpack.c.l.b16 %v124
    %v589 = vunpack.c.h.b16 %v124
    %v590 = vunpack.c.l.b16 %v125
    %v591 = vunpack.c.h.b16 %v125
    %v592 = vunpack.c.l.b16 %v126
    %v593 = vunpack.c.h.b16 %v126
    %v594 = vunpack.c.l.b16 %v127
    %v595 = vunpack.c.h.b16 %v127
    %v596 = vunpack.c.l.b16 %v128
    %v597 = vunpack.c.h.b16 %v128
    %v598 = vunpack.c.l.b16 %v129
    %v599 = vunpack.c.h.b16 %v129
    %v600 = vunpack.c.l.b16 %v130
    %v601 = vunpack.c.h.b16 %v130
    %v602 = vunpack.c.l.b16 %v131
    %v603 = vunpack.c.h.b16 %v131
    %v604 = vunpack.c.l.b16 %v132
    %v605 = vunpack.c.h.b16 %v132
    %v606 = vunpack.c.l.b16 %v133
    %v607 = vunpack.c.h.b16 %v133
    %v608 = vunpack.c.l.b16 %v134
    %v609 = vunpack.c.h.b16 %v134
    %v610 = vunpack.c.l.b16 %v135
    %v611 = vunpack.c.h.b16 %v135
    %v612 = vunpack.c.l.b16 %v136
    %v613 = vunpack.c.h.b16 %v136
    %v614 = vunpack.c.l.b16 %v137
    %v615 = vunpack.c.h.b16 %v137
    %v616 = vunpack.c.l.b16 %v138
    %v617 = vunpack.c.h.b16 %v138
    %v618 = vunpack.c.l.b16 %v139
    %v619 = vunpack.c.h.b16 %v139
    %v620 = vunpack.c.l.b16 %v140
    %v621 = vunpack.c.h.b16 %v140
    %v622 = vunpack.c.l.b16 %v141
    %v623 = vunpack.c.h.b16 %v141
    %v624 = vunpack.c.l.b16 %v142
    %v625 = vunpack.c.h.b16 %v142
    %v626 = vunpack.c.l.b16 %v143
    %v627 = vunpack.c.h.b16 %v143
    %v628 = vunpack.c.l.b16 %v144
    %v629 = vunpack.c.h.b16 %v144
    %v630 = vunpack.c.l.b16 %v145
    %v631 = vunpack.c.h.b16 %v145
    %v632 = vunpack.c.l.b16 %v146
    %v633 = vunpack.c.h.b16 %v146
    %v634 = vunpack.c.l.b16 %v147
    %v635 = vunpack.c.h.b16 %v147
    %v636 = vunpack.c.l.b16 %v148
    %v637 = vunpack.c.h.b16 %v148
    %v638 = vunpack.c.l.b16 %v149
    %v639 = vunpack.c.h.b16 %v149
    %v640 = vunpack.c.l.b16 %v150
    %v641 = vunpack.c.h.b16 %v150
    %v642 = vunpack.c.l.b16 %v151
    %v643 = vunpack.c.h.b16 %v151
    %v644 = vunpack.c.l.b16 %v152
    %v645 = vunpack.c.h.b16 %v152
    %v646 = vunpack.c.l.b16 %v153
    %v647 = vunpack.c.h.b16 %v153
    %v648 = vunpack.c.l.b16 %v154
    %v649 = vunpack.c.h.b16 %v154
    %v650 = vunpack.c.l.b16 %v155
    %v651 = vunpack.c.h.b16 %v155
    %v652 = vunpack.c.l.b16 %v156
    %v653 = vunpack.c.h.b16 %v156
    %v654 = vunpack.c.l.b16 %v157
    %v655 = vunpack.c.h.b16 %v157
    %v656 = vunpack.c.l.b16 %v158
    %v657 = vunpack.c.h.b16 %v158
    %v658 = vunpack.c.l.b16 %v159
    %v659 = vunpack.c.h.b16 %v159
    %v660 = vunpack.c.l.b16 %v160
    %v661 = vunpack.c.h.b16 %v160
    %v662 = vunpack.c.l.b16 %v161
    %v663 = vunpack.c.h.b16 %v161
    %v664 = vunpack.c.l.b16 %v162
    %v665 = vunpack.c.h.b16 %v162
    %v666 = vunpack.c.l.b16 %v163
    %v667 = vunpack.c.h.b16 %v163
    %v668 = vunpack.c.l.b16 %v164
    %v669 = vunpack.c.h.b16 %v164
    %v670 = vunpack.c.l.b16 %v165
    %v671 = vunpack.c.h.b16 %v165
    %v672 = vunpack.c.l.b16 %v166
    %v673 = vunpack.c.h.b16 %v166
    %v674 = vunpack.c.l.b16 %v167
    %v675 = vunpack.c.h.b16 %v167
    %v676 = vunpack.c.l.b16 %v168
    %v677 = vunpack.c.h.b16 %v168
    %v678 = vunpack.c.l.b16 %v169
    %v679 = vunpack.c.h.b16 %v169
    %v680 = vunpack.c.l.b16 %v170
    %v681 = vunpack.c.h.b16 %v170
    %v682 = vunpack.c.l.b16 %v171
    %v683 = vunpack.c.h.b16 %v171
    %v684 = vunpack.c.l.b16 %v172
    %v685 = vunpack.c.h.b16 %v172
    %v686 = vunpack.c.l.b16 %v173
    %v687 = vunpack.c.h.b16 %v173
    %v688 = vunpack.c.l.b16 %v174
    %v689 = vunpack.c.h.b16 %v174
    %v690 = vunpack.c.l.b16 %v175
    %v691 = vunpack.c.h.b16 %v175
    %v692 = vunpack.c.l.b16 %v176
    %v693 = vunpack.c.h.b16 %v176
    %v694 = vunpack.c.l.b16 %v177
    %v695 = vunpack.c.h.b16 %v177
    %v696 = vunpack.c.l.b16 %v178
    %v697 = vunpack.c.h.b16 %v178
    %v698 = vunpack.c.l.b16 %v179
    %v699 = vunpack.c.h.b16 %v179
    %v700 = vunpack.c.l.b16 %v180
    %v701 = vunpack.c.h.b16 %v180
    %v702 = vunpack.c.l.b16 %v181
    %v703 = vunpack.c.h.b16 %v181
    %v704 = vunpack.c.l.b16 %v182
    %v705 = vunpack.c.h.b16 %v182
    %v706 = vunpack.c.l.b16 %v183
    %v707 = vunpack.c.h.b16 %v183
    %v708 = vunpack.c.l.b16 %v184
    %v709 = vunpack.c.h.b16 %v184
    %v710 = vunpack.c.l.b16 %v185
    %v711 = vunpack.c.h.b16 %v185
    %v712 = vunpack.c.l.b16 %v186
    %v713 = vunpack.c.h.b16 %v186
    %v714 = vunpack.c.l.b16 %v187
    %v715 = vunpack.c.h.b16 %v187
    %v716 = vunpack.c.l.b16 %v188
    %v717 = vunpack.c.h.b16 %v188
    %v718 = vunpack.c.l.b16 %v189
    %v719 = vunpack.c.h.b16 %v189
    %v720 = vunpack.c.l.b16 %v190
    %v721 = vunpack.c.h.b16 %v190
    %v722 = vunpack.c.l.b16 %v191
    %v723 = vunpack.c.h.b16 %v191
    %v724 = vunpack.c.l.b16 %v192
    %v725 = vunpack.c.h.b16 %v192
    %v726 = vunpack.c.l.b16 %v193
    %v727 = vunpack.c.h.b16 %v193
    %v728 = vunpack.c.l.b16 %v194
    %v729 = vunpack.c.h.b16 %v194
    %v730 = vunpack.c.l.b16 %v195
    %v731 = vunpack.c.h.b16 %v195
    %v732 = vunpack.c.l.b16 %v196
    %v733 = vunpack.c.h.b16 %v196
    %v734 = vunpack.c.l.b16 %v197
    %v735 = vunpack.c.h.b16 %v197
    %v736 = vunpack.c.l.b16 %v198
    %v737 = vunpack.c.h.b16 %v198
    %v738 = vunpack.c.l.b16 %v199
    %v739 = vunpack.c.h.b16 %v199
    %v740 = vunpack.c.l.b16 %v200
    %v741 = vunpack.c.h.b16 %v200
    %v742 = vunpack.c.l.b16 %v201
    %v743 = vunpack.c.h.b16 %v201
    %v744 = vunpack.c.l.b16 %v202
    %v745 = vunpack.c.h.b16 %v202
    %v746 = vunpack.c.l.b16 %v203
    %v747 = vunpack.c.h.b16 %v203
    %v748 = vunpack.c.l.b16 %v204
    %v749 = vunpack.c.h.b16 %v204
    %v750 = vunpack.c.l.b16 %v205
    %v751 = vunpack.c.h.b16 %v205
    %v752 = vunpack.c.l.b16 %v206
    %v753 = vunpack.c.h.b16 %v206
    %v754 = vunpack.c.l.b16 %v207
    %v755 = vunpack.c.h.b16 %v207
    %v756 = vunpack.c.l.b16 %v208
    %v757 = vunpack.c.h.b16 %v208
    %v758 = vunpack.c.l.b16 %v209
    %v759 = vunpack.c.h.b16 %v209
    %v760 = vunpack.c.l.b16 %v210
    %v761 = vunpack.c.h.b16 %v210
    %v762 = vunpack.c.l.b16 %v211
    %v763 = vunpack.c.h.b16 %v211
    %v764 = vunpack.c.l.b16 %v212
    %v765 = vunpack.c.h.b16 %v212
    %v766 = vunpack.c.l.b16 %v213
    %v767 = vunpack.c.h.b16 %v213
    %v768 = vunpack.c.l.b16 %v214
    %v769 = vunpack.c.h.b16 %v214
    %v770 = vunpack.c.l.b16 %v215
    %v771 = vunpack.c.h.b16 %v215
    %v772 = vunpack.c.l.b16 %v216
    %v773 = vunpack.c.h.b16 %v216
    %v774 = vunpack.c.l.b16 %v217
    %v775 = vunpack.c.h.b16 %v217
    %v776 = vunpack.c.l.b16 %v218
    %v777 = vunpack.c.h.b16 %v218
    %v778 = vunpack.c.l.b16 %v219
    %v779 = vunpack.c.h.b16 %v219
    %v780 = vunpack.c.l.b16 %v220
    %v781 = vunpack.c.h.b16 %v220
    %v782 = vunpack.c.l.b16 %v221
    %v783 = vunpack.c.h.b16 %v221
    %v784 = vunpack.c.l.b16 %v222
    %v785 = vunpack.c.h.b16 %v222
    %v786 = vunpack.c.l.b16 %v223
    %v787 = vunpack.c.h.b16 %v223
    %v788 = vunpack.c.l.b16 %v224
    %v789 = vunpack.c.h.b16 %v224
    %v790 = vunpack.c.l.b16 %v225
    %v791 = vunpack.c.h.b16 %v225
    %v792 = vunpack.c.l.b16 %v226
    %v793 = vunpack.c.h.b16 %v226
    %v794 = vunpack.c.l.b16 %v227
    %v795 = vunpack.c.h.b16 %v227
    %v796 = vunpack.c.l.b16 %v228
    %v797 = vunpack.c.h.b16 %v228
    %v798 = vunpack.c.l.b16 %v229
    %v799 = vunpack.c.h.b16 %v229
    %v800 = vunpack.c.l.b16 %v230
    %v801 = vunpack.c.h.b16 %v230
    %v802 = vunpack.c.l.b16 %v231
    %v803 = vunpack.c.h.b16 %v231
    %v804 = vunpack.c.l.b16 %v232
    %v805 = vunpack.c.h.b16 %v232
    %v806 = vunpack.c.l.b16 %v233
    %v807 = vunpack.c.h.b16 %v233
    %v808 = vunpack.c.l.b16 %v234
    %v809 = vunpack.c.h.b16 %v234
    %v810 = vunpack.c.l.b16 %v235
    %v811 = vunpack.c.h.b16 %v235
    %v812 = vunpack.c.l.b16 %v236
    %v813 = vunpack.c.h.b16 %v236
    %v814 = vunpack.c.l.b16 %v237
    %v815 = vunpack.c.h.b16 %v237
    %v816 = vunpack.c.l.b16 %v238
    %v817 = vunpack.c.h.b16 %v238
    %v818 = vunpack.c.l.b16 %v239
    %v819 = vunpack.c.h.b16 %v239
    %v820 = vunpack.c.l.b16 %v240
    %v821 = vunpack.c.h.b16 %v240
    %v822 = vunpack.c.l.b16 %v241
    %v823 = vunpack.c.h.b16 %v241
    %v824 = vunpack.c.l.b16 %v242
    %v825 = vunpack.c.h.b16 %v242
    %v826 = vunpack.c.l.b16 %v243
    %v827 = vunpack.c.h.b16 %v243
    %v828 = vunpack.c.l.b16 %v244
    %v829 = vunpack.c.h.b16 %v244
    %v830 = vunpack.c.l.b16 %v245
    %v831 = vunpack.c.h.b16 %v245
    %v832 = vunpack.c.l.b16 %v246
    %v833 = vunpack.c.h.b16 %v246
    %v834 = vunpack.c.l.b16 %v247
    %v835 = vunpack.c.h.b16 %v247
    %v836 = vunpack.c.l.b16 %v248
    %v837 = vunpack.c.h.b16 %v248
    %v838 = vunpack.c.l.b16 %v249
    %v839 = vunpack.c.h.b16 %v249
    %v840 = vunpack.c.l.b16 %v250
    %v841 = vunpack.c.h.b16 %v250
    %v842 = vunpack.c.l.b16 %v251
    %v843 = vunpack.c.h.b16 %v251
    %v844 = vunpack.c.l.b16 %v252
    %v845 = vunpack.c.h.b16 %v252
    %v846 = vunpack.c.l.b16 %v253
    %v847 = vunpack.c.h.b16 %v253
    %v848 = vunpack.c.l.b16 %v254
    %v849 = vunpack.c.h.b16 %v254
    %v850 = vunpack.c.l.b16 %v255
    %v851 = vunpack.c.h.b16 %v255
    %v852 = vunpack.c.l.b16 %v256
    %v853 = vunpack.c.h.b16 %v256
    %v854 = vunpack.c.l.b16 %v257
    %v855 = vunpack.c.h.b16 %v257
    %v856 = vunpack.c.l.b16 %v258
    %v857 = vunpack.c.h.b16 %v258
    %v858 = vunpack.c.l.b16 %v259
    %v859 = vunpack.c.h.b16 %v259
    %v860 = vunpack.c.l.b16 %v260
    %v861 = vunpack.c.h.b16 %v260
    %v862 = vunpack.c.l.b16 %v261
    %v863 = vunpack.c.h.b16 %v261
    %v864 = vunpack.c.l.b16 %v262
    %v865 = vunpack.c.h.b16 %v262
    %v866 = vunpack.c.l.b16 %v263
    %v867 = vunpack.c.h.b16 %v263
    %v868 = vunpack.c.l.b16 %v264
    %v869 = vunpack.c.h.b16 %v264
    %v870 = vunpack.c.l.b16 %v265
    %v871 = vunpack.c.h.b16 %v265
    %v872 = vunpack.c.l.b16 %v266
    %v873 = vunpack.c.h.b16 %v266
    %v874 = vunpack.c.l.b16 %v267
    %v875 = vunpack.c.h.b16 %v267
    %v876 = vunpack.c.l.b16 %v268
    %v877 = vunpack.c.h.b16 %v268
    %v878 = vunpack.c.l.b16 %v269
    %v879 = vunpack.c.h.b16 %v269
    %v880 = vpack.c.b16 %v492, %v488
    %v881 = vpack.c.b16 %v493, %v489
    %v882 = vpack.c.b16 %v494, %v490
    %v883 = vpack.c.b16 %v495, %v491
    %v884 = vpack.c.b16 %v500, %v496
    %v885 = vpack.c.b16 %v501, %v497
    %v886 = vpack.c.b16 %v502, %v498
    %v887 = vpack.c.b16 %v503, %v499
    %v888 = vpack.c.b16 %v508, %v504
    %v889 = vpack.c.b16 %v509, %v505
    %v890 = vpack.c.b16 %v510, %v506
    %v891 = vpack.c.b16 %v511, %v507
    %v892 = vpack.c.b16 %v516, %v512
    %v893 = vpack.c.b16 %v517, %v513
    %v894 = vpack.c.b16 %v518, %v514
    %v895 = vpack.c.b16 %v519, %v515
    %v896 = vpack.c.b16 %v524, %v520
    %v897 = vpack.c.b16 %v525, %v521
    %v898 = vpack.c.b16 %v526, %v522
    %v899 = vpack.c.b16 %v527, %v523
    %v900 = vpack.c.b16 %v532, %v528
    %v901 = vpack.c.b16 %v533, %v529
    %v902 = vpack.c.b16 %v534, %v530
    %v903 = vpack.c.b16 %v535, %v531
    %v904 = vpack.c.b16 %v540, %v536
    %v905 = vpack.c.b16 %v541, %v537
    %v906 = vpack.c.b16 %v542, %v538
    %v907 = vpack.c.b16 %v543, %v539
    %v908 = vpack.c.b16 %v548, %v544
    %v909 = vpack.c.b16 %v549, %v545
    %v910 = vpack.c.b16 %v550, %v546
    %v911 = vpack.c.b16 %v551, %v547
    %v912 = vpack.c.b16 %v556, %v552
    %v913 = vpack.c.b16 %v557, %v553
    %v914 = vpack.c.b16 %v558, %v554
    %v915 = vpack.c.b16 %v559, %v555
    %v916 = vpack.c.b16 %v564, %v560
    %v917 = vpack.c.b16 %v565, %v561
    %v918 = vpack.c.b16 %v566, %v562
    %v919 = vpack.c.b16 %v567, %v563
    %v920 = vpack.c.b16 %v572, %v568
    %v921 = vpack.c.b16 %v573, %v569
    %v922 = vpack.c.b16 %v574, %v570
    %v923 = vpack.c.b16 %v575, %v571
    %v924 = vpack.c.b16 %v580, %v576
    %v925 = vpack.c.b16 %v581, %v577
    %v926 = vpack.c.b16 %v582, %v578
    %v927 = vpack.c.b16 %v583, %v579
    %v928 = vpack.c.b16 %v588, %v584
    %v929 = vpack.c.b16 %v589, %v585
    %v930 = vpack.c.b16 %v590, %v586
    %v931 = vpack.c.b16 %v591, %v587
    %v932 = vpack.c.b16 %v596, %v592
    %v933 = vpack.c.b16 %v597, %v593
    %v934 = vpack.c.b16 %v598, %v594
    %v935 = vpack.c.b16 %v599, %v595
    %v936 = vpack.c.b16 %v604, %v600
    %v937 = vpack.c.b16 %v605, %v601
    %v938 = vpack.c.b16 %v606, %v602
    %v939 = vpack.c.b16 %v607, %v603
    %v940 = vpack.c.b16 %v612, %v608
    %v941 = vpack.c.b16 %v613, %v609
    %v942 = vpack.c.b16 %v614, %v610
    %v943 = vpack.c.b16 %v615, %v611
    %v944 = vpack.c.b16 %v620, %v616
    %v945 = vpack.c.b16 %v621, %v617
    %v946 = vpack.c.b16 %v622, %v618
    %v947 = vpack.c.b16 %v623, %v619
    %v948 = vpack.c.b16 %v628, %v624
    %v949 = vpack.c.b16 %v629, %v625
    %v950 = vpack.c.b16 %v630, %v626
    %v951 = vpack.c.b16 %v631, %v627
    %v952 = vpack.c.b16 %v636, %v632
    %v953 = vpack.c.b16 %v637, %v633
    %v954 = vpack.c.b16 %v638, %v634
    %v955 = vpack.c.b16 %v639, %v635
    %v956 = vpack.c.b16 %v644, %v640
    %v957 = vpack.c.b16 %v645, %v641
    %v958 = vpack.c.b16 %v646, %v642
    %v959 = vpack.c.b16 %v647, %v643
    %v960 = vpack.c.b16 %v652, %v648
    %v961 = vpack.c.b16 %v653, %v649
    %v962 = vpack.c.b16 %v654, %v650
    %v963 = vpack.c.b16 %v655, %v651
    %v964 = vpack.c.b16 %v660, %v656
    %v965 = vpack.c.b16 %v661, %v657
    %v966 = vpack.c.b16 %v662, %v658
    %v967 = vpack.c.b16 %v663, %v659
    %v968 = vpack.c.b16 %v668, %v664
    %v969 = vpack.c.b16 %v669, %v665
    %v970 = vpack.c.b16 %v670, %v666
    %v971 = vpack.c.b16 %v671, %v667
    %v972 = vpack.c.b16 %v676, %v672
    %v973 = vpack.c.b16 %v677, %v673
    %v974 = vpack.c.b16 %v678, %v674
    %v975 = vpack.c.b16 %v679, %v675
    %v976 = vpack.c.b16 %v684, %v680
    %v977 = vpack.c.b16 %v685, %v681
    %v978 = vpack.c.b16 %v686, %v682
    %v979 = vpack.c.b16 %v687, %v683
    %v980 = vpack.c.b16 %v692, %v688
    %v981 = vpack.c.b16 %v693, %v689
    %v982 = vpack.c.b16 %v694, %v690
    %v983 = vpack.c.b16 %v695, %v691
    %v984 = vpack.c.b16 %v700, %v696
    %v985 = vpack.c.b16 %v701, %v697
    %v986 = vpack.c.b16 %v702, %v698
    %v987 = vpack.c.b16 %v703, %v699
    %v988 = vpack.c.b16 %v708, %v704
    %v989 = vpack.c.b16 %v709, %v705
    %v990 = vpack.c.b16 %v710, %v706
    %v991 = vpack.c.b16 %v711, %v707
    %v992 = vpack.c.b16 %v716, %v712
    %v993 = vpack.c.b16 %v717, %v713
    %v994 = vpack.c.b16 %v718, %v714
    %v995 = vpack.c.b16 %v719, %v715
    %v996 = vpack.c.b16 %v724, %v720
    %v997 = vpack.c.b16 %v725, %v721
    %v998 = vpack.c.b16 %v726, %v722
    %v999 = vpack.c.b16 %v727, %v723
    %v1000 = vpack.c.b16 %v732, %v728
    %v1001 = vpack.c.b16 %v733, %v729
    %v1002 = vpack.c.b16 %v734, %v730
    %v1003 = vpack.c.b16 %v735, %v731
    %v1004 = vpack.c.b16 %v740, %v736
    %v1005 = vpack.c.b16 %v741, %v737
    %v1006 = vpack.c.b16 %v742, %v738
    %v1007 = vpack.c.b16 %v743, %v739
    %v1008 = vpack.c.b16 %v748, %v744
    %v1009 = vpack.c.b16 %v749, %v745
    %v1010 = vpack.c.b16 %v750, %v746
    %v1011 = vpack.c.b16 %v751, %v747
    %v1012 = vpack.c.b16 %v756, %v752
    %v1013 = vpack.c.b16 %v757, %v753
    %v1014 = vpack.c.b16 %v758, %v754
    %v1015 = vpack.c.b16 %v759, %v755
    %v1016 = vpack.c.b16 %v764, %v760
    %v1017 = vpack.c.b16 %v765, %v761
    %v1018 = vpack.c.b16 %v766, %v762
    %v1019 = vpack.c.b16 %v767, %v763
    %v1020 = vpack.c.b16 %v772, %v768
    %v1021 = vpack.c.b16 %v773, %v769
    %v1022 = vpack.c.b16 %v774, %v770
    %v1023 = vpack.c.b16 %v775, %v771
    %v1024 = vpack.c.b16 %v780, %v776
    %v1025 = vpack.c.b16 %v781, %v777
    %v1026 = vpack.c.b16 %v782, %v778
    %v1027 = vpack.c.b16 %v783, %v779
    %v1028 = vpack.c.b16 %v788, %v784
    %v1029 = vpack.c.b16 %v789, %v785
    %v1030 = vpack.c.b16 %v790, %v786
    %v1031 = vpack.c.b16 %v791, %v787
    %v1032 = vpack.c.b16 %v796, %v792
    %v1033 = vpack.c.b16 %v797, %v793
    %v1034 = vpack.c.b16 %v798, %v794
    %v1035 = vpack.c.b16 %v799, %v795
    %v1036 = vpack.c.b16 %v804, %v800
    %v1037 = vpack.c.b16 %v805, %v801
    %v1038 = vpack.c.b16 %v806, %v802
    %v1039 = vpack.c.b16 %v807, %v803
    %v1040 = vpack.c.b16 %v812, %v808
    %v1041 = vpack.c.b16 %v813, %v809
    %v1042 = vpack.c.b16 %v814, %v810
    %v1043 = vpack.c.b16 %v815, %v811
    %v1044 = vpack.c.b16 %v820, %v816
    %v1045 = vpack.c.b16 %v821, %v817
    %v1046 = vpack.c.b16 %v822, %v818
    %v1047 = vpack.c.b16 %v823, %v819
    %v1048 = vpack.c.b16 %v828, %v824
    %v1049 = vpack.c.b16 %v829, %v825
    %v1050 = vpack.c.b16 %v830, %v826
    %v1051 = vpack.c.b16 %v831, %v827
    %v1052 = vpack.c.b16 %v836, %v832
    %v1053 = vpack.c.b16 %v837, %v833
    %v1054 = vpack.c.b16 %v838, %v834
    %v1055 = vpack.c.b16 %v839, %v835
    %v1056 = vpack.c.b16 %v844, %v840
    %v1057 = vpack.c.b16 %v845, %v841
    %v1058 = vpack.c.b16 %v846, %v842
    %v1059 = vpack.c.b16 %v847, %v843
    %v1060 = vpack.c.b16 %v852, %v848
    %v1061 = vpack.c.b16 %v853, %v849
    %v1062 = vpack.c.b16 %v854, %v850
    %v1063 = vpack.c.b16 %v855, %v851
    %v1064 = vpack.c.b16 %v860, %v856
    %v1065 = vpack.c.b16 %v861, %v857
    %v1066 = vpack.c.b16 %v862, %v858
    %v1067 = vpack.c.b16 %v863, %v859
    %v1068 = vpack.c.b16 %v868, %v864
    %v1069 = vpack.c.b16 %v869, %v865
    %v1070 = vpack.c.b16 %v870, %v866
    %v1071 = vpack.c.b16 %v871, %v867
    %v1072 = vpack.c.b16 %v876, %v872
    %v1073 = vpack.c.b16 %v877, %v873
    %v1074 = vpack.c.b16 %v878, %v874
    %v1075 = vpack.c.b16 %v879, %v875
    %vm1272 = vcmask 130048
    %v1274 = vsel %vm1272, %v73, 0
    %1276 = vmatprep.subr.bf16.mxu0 %v881
    %1277 = vmatpush1.bf16.msra.mxu0 %v880
    %1278 = vmatprep.subr.bf16.mxu0 %v885
    %1279 = vmatpush1.bf16.msra.mxu0 %v884
    %1280 = vmatprep.subr.bf16.mxu0 %v889
    %1281 = vmatpush1.bf16.msra.mxu0 %v888
    %1282 = vmatprep.subr.bf16.mxu0 %v893
    %1283 = vmatpush1.bf16.msra.mxu0 %v892
    %1284 = vmatprep.subr.bf16.mxu0 %v897
    %1285 = vmatpush1.bf16.msra.mxu0 %v896
    %1286 = vmatprep.subr.bf16.mxu0 %v901
    %1287 = vmatpush1.bf16.msra.mxu0 %v900
    %1288 = vmatprep.subr.bf16.mxu0 %v905
    %1289 = vmatpush1.bf16.msra.mxu0 %v904
    %1290 = vmatprep.subr.bf16.mxu0 %v909
    %1291 = vmatpush1.bf16.msra.mxu0 %v908
    %1292 = vmatprep.subr.bf16.mxu0 %v913
    %1293 = vmatpush1.bf16.msra.mxu0 %v912
    %1294 = vmatprep.subr.bf16.mxu0 %v917
    %1295 = vmatpush1.bf16.msra.mxu0 %v916
    %1296 = vmatprep.subr.bf16.mxu0 %v921
    %1297 = vmatpush1.bf16.msra.mxu0 %v920
    %1298 = vmatprep.subr.bf16.mxu0 %v925
    %1299 = vmatpush1.bf16.msra.mxu0 %v924
    %1300 = vmatprep.subr.bf16.mxu0 %v929
    %1301 = vmatpush1.bf16.msra.mxu0 %v928
    %1302 = vmatprep.subr.bf16.mxu0 %v933
    %1303 = vmatpush1.bf16.msra.mxu0 %v932
    %1304 = vmatprep.subr.bf16.mxu0 %v937
    %1305 = vmatpush1.bf16.msra.mxu0 %v936
    %1306 = vmatprep.subr.bf16.mxu0 %v941
    %1307 = vmatpush1.bf16.msra.mxu0 %v940
    %1308 = vmatprep.mubr.bf16.mxu0 %v68
    %1309 = vmatmul.mubr.bf16.gmra.mrb[0].mxu0 %v67
    %v1310 = vpop.f32.mrb[0].mxu0
    %v1311 = vadd.f32 %v275, %v1310
    %v1312 = vpop.f32.mrb[0].mxu0
    %v1313 = vadd.f32 %v279, %v1312
    %v1314 = vpop.f32.mrb[0].mxu0
    %v1315 = vpop.f32.mrb[0].mxu0
    %1316 = vdwg.mxu0
    %1317 = vmatprep.subr.bf16.mxu0 %v945
    %1318 = vmatpush1.bf16.msra.mxu0 %v944
    %1319 = vmatprep.subr.bf16.mxu0 %v949
    %1320 = vmatpush1.bf16.msra.mxu0 %v948
    %1321 = vmatprep.subr.bf16.mxu0 %v953
    %1322 = vmatpush1.bf16.msra.mxu0 %v952
    %1323 = vmatprep.subr.bf16.mxu0 %v957
    %1324 = vmatpush1.bf16.msra.mxu0 %v956
    %1325 = vmatprep.subr.bf16.mxu0 %v961
    %1326 = vmatpush1.bf16.msra.mxu0 %v960
    %1327 = vmatprep.subr.bf16.mxu0 %v965
    %1328 = vmatpush1.bf16.msra.mxu0 %v964
    %1329 = vmatprep.subr.bf16.mxu0 %v969
    %1330 = vmatpush1.bf16.msra.mxu0 %v968
    %1331 = vmatprep.subr.bf16.mxu0 %v973
    %1332 = vmatpush1.bf16.msra.mxu0 %v972
    %1333 = vmatprep.subr.bf16.mxu0 %v977
    %1334 = vmatpush1.bf16.msra.mxu0 %v976
    %1335 = vmatprep.subr.bf16.mxu0 %v981
    %1336 = vmatpush1.bf16.msra.mxu0 %v980
    %1337 = vmatprep.subr.bf16.mxu0 %v985
    %1338 = vmatpush1.bf16.msra.mxu0 %v984
    %1339 = vmatprep.subr.bf16.mxu0 %v989
    %1340 = vmatpush1.bf16.msra.mxu0 %v988
    %1341 = vmatprep.subr.bf16.mxu0 %v993
    %1342 = vmatpush1.bf16.msra.mxu0 %v992
    %1343 = vmatprep.subr.bf16.mxu0 %v997
    %1344 = vmatpush1.bf16.msra.mxu0 %v996
    %1345 = vmatprep.subr.bf16.mxu0 %v1001
    %1346 = vmatpush1.bf16.msra.mxu0 %v1000
    %1347 = vmatprep.subr.bf16.mxu0 %v1005
    %1348 = vmatpush1.bf16.msra.mxu0 %v1004
    %1349 = vmatprep.mubr.bf16.mxu0 %v70
    %1350 = vmatmul.mubr.bf16.gmra.mrb[0].mxu0 %v69
    %v1351 = vpop.f32.mrb[0].mxu0
    %v1352 = vadd.f32 %v1311, %v1351
    %v1353 = vpop.f32.mrb[0].mxu0
    %v1354 = vadd.f32 %v1313, %v1353
    %v1355 = vpop.f32.mrb[0].mxu0
    %v1356 = vpop.f32.mrb[0].mxu0
    %1357 = vdwg.mxu0
    %1358 = vmatprep.subr.bf16.mxu0 %v1009
    %1359 = vmatpush1.bf16.msra.mxu0 %v1008
    %1360 = vmatprep.subr.bf16.mxu0 %v1013
    %1361 = vmatpush1.bf16.msra.mxu0 %v1012
    %1362 = vmatprep.subr.bf16.mxu0 %v1017
    %1363 = vmatpush1.bf16.msra.mxu0 %v1016
    %1364 = vmatprep.subr.bf16.mxu0 %v1021
    %1365 = vmatpush1.bf16.msra.mxu0 %v1020
    %1366 = vmatprep.subr.bf16.mxu0 %v1025
    %1367 = vmatpush1.bf16.msra.mxu0 %v1024
    %1368 = vmatprep.subr.bf16.mxu0 %v1029
    %1369 = vmatpush1.bf16.msra.mxu0 %v1028
    %1370 = vmatprep.subr.bf16.mxu0 %v1033
    %1371 = vmatpush1.bf16.msra.mxu0 %v1032
    %1372 = vmatprep.subr.bf16.mxu0 %v1037
    %1373 = vmatpush1.bf16.msra.mxu0 %v1036
    %1374 = vmatprep.subr.bf16.mxu0 %v1041
    %1375 = vmatpush1.bf16.msra.mxu0 %v1040
    %1376 = vmatprep.subr.bf16.mxu0 %v1045
    %1377 = vmatpush1.bf16.msra.mxu0 %v1044
    %1378 = vmatprep.subr.bf16.mxu0 %v1049
    %1379 = vmatpush1.bf16.msra.mxu0 %v1048
    %1380 = vmatprep.subr.bf16.mxu0 %v1053
    %1381 = vmatpush1.bf16.msra.mxu0 %v1052
    %1382 = vmatprep.subr.bf16.mxu0 %v1057
    %1383 = vmatpush1.bf16.msra.mxu0 %v1056
    %1384 = vmatprep.subr.bf16.mxu0 %v1061
    %1385 = vmatpush1.bf16.msra.mxu0 %v1060
    %1386 = vmatprep.subr.bf16.mxu0 %v1065
    %1387 = vmatpush1.bf16.msra.mxu0 %v1064
    %1388 = vmatprep.subr.bf16.mxu0 %v1069
    %1389 = vmatpush1.bf16.msra.mxu0 %v1068
    %1390 = vmatprep.mubr.bf16.mxu0 %v72
    %1391 = vmatmul.mubr.bf16.gmra.mrb[0].mxu0 %v71
    %v1392 = vpop.f32.mrb[0].mxu0
    %v1393 = vadd.f32 %v1352, %v1392
    %v1394 = vpop.f32.mrb[0].mxu0
    %v1395 = vadd.f32 %v1354, %v1394
    %v1396 = vpop.f32.mrb[0].mxu0
    %v1397 = vpop.f32.mrb[0].mxu0
    %1398 = vdwg.mxu0
    %1399 = vmatprep.subr.bf16.mxu0 %v1073
    %1400 = vmatpush1.bf16.msra.mxu0 %v1072
    %1401 = vmatprep.subr.bf16.mxu0 0
    %1402 = vmatpush1.bf16.msra.mxu0 0
    %1403 = vmatprep.subr.bf16.mxu0 0
    %1404 = vmatpush1.bf16.msra.mxu0 0
    %1405 = vmatprep.subr.bf16.mxu0 0
    %1406 = vmatpush1.bf16.msra.mxu0 0
    %1407 = vmatprep.subr.bf16.mxu0 0
    %1408 = vmatpush1.bf16.msra.mxu0 0
    %1409 = vmatprep.subr.bf16.mxu0 0
    %1410 = vmatpush1.bf16.msra.mxu0 0
    %1411 = vmatprep.subr.bf16.mxu0 0
    %1412 = vmatpush1.bf16.msra.mxu0 0
    %1413 = vmatprep.subr.bf16.mxu0 0
    %1414 = vmatpush1.bf16.msra.mxu0 0
    %1415 = vmatprep.subr.bf16.mxu0 0
    %1416 = vmatpush1.bf16.msra.mxu0 0
    %1417 = vmatprep.subr.bf16.mxu0 0
    %1418 = vmatpush1.bf16.msra.mxu0 0
    %1419 = vmatprep.subr.bf16.mxu0 0
    %1420 = vmatpush1.bf16.msra.mxu0 0
    %1421 = vmatprep.subr.bf16.mxu0 0
    %1422 = vmatpush1.bf16.msra.mxu0 0
    %1423 = vmatprep.subr.bf16.mxu0 0
    %1424 = vmatpush1.bf16.msra.mxu0 0
    %1425 = vmatprep.subr.bf16.mxu0 0
    %1426 = vmatpush1.bf16.msra.mxu0 0
    %1427 = vmatprep.subr.bf16.mxu0 0
    %1428 = vmatpush1.bf16.msra.mxu0 0
    %1429 = vmatprep.subr.bf16.mxu0 0
    %1430 = vmatpush1.bf16.msra.mxu0 0
    %1431 = vmatprep.mubr.bf16.mxu0 0
    %1432 = vmatmul.mubr.bf16.gmra.mrb[0].mxu0 %v1274
    %v1433 = vpop.f32.mrb[0].mxu0
    %v1434 = vadd.f32 %v1393, %v1433
    %v1435 = vpop.f32.mrb[0].mxu0
    %v1436 = vadd.f32 %v1395, %v1435
    %v1437 = vpop.f32.mrb[0].mxu0
    %v1438 = vpop.f32.mrb[0].mxu0
    %1439 = vdwg.mxu0
    %1440 = vmatprep.subr.bf16.mxu0 %v883
    %1441 = vmatpush1.bf16.msra.mxu0 %v882
    %1442 = vmatprep.subr.bf16.mxu0 %v887
    %1443 = vmatpush1.bf16.msra.mxu0 %v886
    %1444 = vmatprep.subr.bf16.mxu0 %v891
    %1445 = vmatpush1.bf16.msra.mxu0 %v890
    %1446 = vmatprep.subr.bf16.mxu0 %v895
    %1447 = vmatpush1.bf16.msra.mxu0 %v894
    %1448 = vmatprep.subr.bf16.mxu0 %v899
    %1449 = vmatpush1.bf16.msra.mxu0 %v898
    %1450 = vmatprep.subr.bf16.mxu0 %v903
    %1451 = vmatpush1.bf16.msra.mxu0 %v902
    %1452 = vmatprep.subr.bf16.mxu0 %v907
    %1453 = vmatpush1.bf16.msra.mxu0 %v906
    %1454 = vmatprep.subr.bf16.mxu0 %v911
    %1455 = vmatpush1.bf16.msra.mxu0 %v910
    %1456 = vmatprep.subr.bf16.mxu0 %v915
    %1457 = vmatpush1.bf16.msra.mxu0 %v914
    %1458 = vmatprep.subr.bf16.mxu0 %v919
    %1459 = vmatpush1.bf16.msra.mxu0 %v918
    %1460 = vmatprep.subr.bf16.mxu0 %v923
    %1461 = vmatpush1.bf16.msra.mxu0 %v922
    %1462 = vmatprep.subr.bf16.mxu0 %v927
    %1463 = vmatpush1.bf16.msra.mxu0 %v926
    %1464 = vmatprep.subr.bf16.mxu0 %v931
    %1465 = vmatpush1.bf16.msra.mxu0 %v930
    %1466 = vmatprep.subr.bf16.mxu0 %v935
    %1467 = vmatpush1.bf16.msra.mxu0 %v934
    %1468 = vmatprep.subr.bf16.mxu0 %v939
    %1469 = vmatpush1.bf16.msra.mxu0 %v938
    %1470 = vmatprep.subr.bf16.mxu0 %v943
    %1471 = vmatpush1.bf16.msra.mxu0 %v942
    %1472 = vmatprep.mubr.bf16.mxu0 %v68
    %1473 = vmatmul.mubr.bf16.gmra.mrb[0].mxu0 %v67
    %v1474 = vpop.f32.mrb[0].mxu0
    %v1475 = vadd.f32 %v283, %v1474
    %v1476 = vpop.f32.mrb[0].mxu0
    %v1477 = vadd.f32 %v287, %v1476
    %v1478 = vpop.f32.mrb[0].mxu0
    %v1479 = vpop.f32.mrb[0].mxu0
    %1480 = vdwg.mxu0
    %1481 = vmatprep.subr.bf16.mxu0 %v947
    %1482 = vmatpush1.bf16.msra.mxu0 %v946
    %1483 = vmatprep.subr.bf16.mxu0 %v951
    %1484 = vmatpush1.bf16.msra.mxu0 %v950
    %1485 = vmatprep.subr.bf16.mxu0 %v955
    %1486 = vmatpush1.bf16.msra.mxu0 %v954
    %1487 = vmatprep.subr.bf16.mxu0 %v959
    %1488 = vmatpush1.bf16.msra.mxu0 %v958
    %1489 = vmatprep.subr.bf16.mxu0 %v963
    %1490 = vmatpush1.bf16.msra.mxu0 %v962
    %1491 = vmatprep.subr.bf16.mxu0 %v967
    %1492 = vmatpush1.bf16.msra.mxu0 %v966
    %1493 = vmatprep.subr.bf16.mxu0 %v971
    %1494 = vmatpush1.bf16.msra.mxu0 %v970
    %1495 = vmatprep.subr.bf16.mxu0 %v975
    %1496 = vmatpush1.bf16.msra.mxu0 %v974
    %1497 = vmatprep.subr.bf16.mxu0 %v979
    %1498 = vmatpush1.bf16.msra.mxu0 %v978
    %1499 = vmatprep.subr.bf16.mxu0 %v983
    %1500 = vmatpush1.bf16.msra.mxu0 %v982
    %1501 = vmatprep.subr.bf16.mxu0 %v987
    %1502 = vmatpush1.bf16.msra.mxu0 %v986
    %1503 = vmatprep.subr.bf16.mxu0 %v991
    %1504 = vmatpush1.bf16.msra.mxu0 %v990
    %1505 = vmatprep.subr.bf16.mxu0 %v995
    %1506 = vmatpush1.bf16.msra.mxu0 %v994
    %1507 = vmatprep.subr.bf16.mxu0 %v999
    %1508 = vmatpush1.bf16.msra.mxu0 %v998
    %1509 = vmatprep.subr.bf16.mxu0 %v1003
    %1510 = vmatpush1.bf16.msra.mxu0 %v1002
    %1511 = vmatprep.subr.bf16.mxu0 %v1007
    %1512 = vmatpush1.bf16.msra.mxu0 %v1006
    %1513 = vmatprep.mubr.bf16.mxu0 %v70
    %1514 = vmatmul.mubr.bf16.gmra.mrb[0].mxu0 %v69
    %v1515 = vpop.f32.mrb[0].mxu0
    %v1516 = vadd.f32 %v1475, %v1515
    %v1517 = vpop.f32.mrb[0].mxu0
    %v1518 = vadd.f32 %v1477, %v1517
    %v1519 = vpop.f32.mrb[0].mxu0
    %v1520 = vpop.f32.mrb[0].mxu0
    %1521 = vdwg.mxu0
    %1522 = vmatprep.subr.bf16.mxu0 %v1011
    %1523 = vmatpush1.bf16.msra.mxu0 %v1010
    %1524 = vmatprep.subr.bf16.mxu0 %v1015
    %1525 = vmatpush1.bf16.msra.mxu0 %v1014
    %1526 = vmatprep.subr.bf16.mxu0 %v1019
    %1527 = vmatpush1.bf16.msra.mxu0 %v1018
    %1528 = vmatprep.subr.bf16.mxu0 %v1023
    %1529 = vmatpush1.bf16.msra.mxu0 %v1022
    %1530 = vmatprep.subr.bf16.mxu0 %v1027
    %1531 = vmatpush1.bf16.msra.mxu0 %v1026
    %1532 = vmatprep.subr.bf16.mxu0 %v1031
    %1533 = vmatpush1.bf16.msra.mxu0 %v1030
    %1534 = vmatprep.subr.bf16.mxu0 %v1035
    %1535 = vmatpush1.bf16.msra.mxu0 %v1034
    %1536 = vmatprep.subr.bf16.mxu0 %v1039
    %1537 = vmatpush1.bf16.msra.mxu0 %v1038
    %1538 = vmatprep.subr.bf16.mxu0 %v1043
    %1539 = vmatpush1.bf16.msra.mxu0 %v1042
    %1540 = vmatprep.subr.bf16.mxu0 %v1047
    %1541 = vmatpush1.bf16.msra.mxu0 %v1046
    %1542 = vmatprep.subr.bf16.mxu0 %v1051
    %1543 = vmatpush1.bf16.msra.mxu0 %v1050
    %1544 = vmatprep.subr.bf16.mxu0 %v1055
    %1545 = vmatpush1.bf16.msra.mxu0 %v1054
    %1546 = vmatprep.subr.bf16.mxu0 %v1059
    %1547 = vmatpush1.bf16.msra.mxu0 %v1058
    %1548 = vmatprep.subr.bf16.mxu0 %v1063
    %1549 = vmatpush1.bf16.msra.mxu0 %v1062
    %1550 = vmatprep.subr.bf16.mxu0 %v1067
    %1551 = vmatpush1.bf16.msra.mxu0 %v1066
    %1552 = vmatprep.subr.bf16.mxu0 %v1071
    %1553 = vmatpush1.bf16.msra.mxu0 %v1070
    %1554 = vmatprep.mubr.bf16.mxu0 %v72
    %1555 = vmatmul.mubr.bf16.gmra.mrb[0].mxu0 %v71
    %v1556 = vpop.f32.mrb[0].mxu0
    %v1557 = vadd.f32 %v1516, %v1556
    %v1558 = vpop.f32.mrb[0].mxu0
    %v1559 = vadd.f32 %v1518, %v1558
    %v1560 = vpop.f32.mrb[0].mxu0
    %v1561 = vpop.f32.mrb[0].mxu0
    %1562 = vdwg.mxu0
    %1563 = vmatprep.subr.bf16.mxu0 %v1075
    %1564 = vmatpush1.bf16.msra.mxu0 %v1074
    %1565 = vmatprep.subr.bf16.mxu0 0
    %1566 = vmatpush1.bf16.msra.mxu0 0
    %1567 = vmatprep.subr.bf16.mxu0 0
    %1568 = vmatpush1.bf16.msra.mxu0 0
    %1569 = vmatprep.subr.bf16.mxu0 0
    %1570 = vmatpush1.bf16.msra.mxu0 0
    %1571 = vmatprep.subr.bf16.mxu0 0
    %1572 = vmatpush1.bf16.msra.mxu0 0
    %1573 = vmatprep.subr.bf16.mxu0 0
    %1574 = vmatpush1.bf16.msra.mxu0 0
    %1575 = vmatprep.subr.bf16.mxu0 0
    %1576 = vmatpush1.bf16.msra.mxu0 0
    %1577 = vmatprep.subr.bf16.mxu0 0
    %1578 = vmatpush1.bf16.msra.mxu0 0
    %1579 = vmatprep.subr.bf16.mxu0 0
    %1580 = vmatpush1.bf16.msra.mxu0 0
    %1581 = vmatprep.subr.bf16.mxu0 0
    %1582 = vmatpush1.bf16.msra.mxu0 0
    %1583 = vmatprep.subr.bf16.mxu0 0
    %1584 = vmatpush1.bf16.msra.mxu0 0
    %1585 = vmatprep.subr.bf16.mxu0 0
    %1586 = vmatpush1.bf16.msra.mxu0 0
    %1587 = vmatprep.subr.bf16.mxu0 0
    %1588 = vmatpush1.bf16.msra.mxu0 0
    %1589 = vmatprep.subr.bf16.mxu0 0
    %1590 = vmatpush1.bf16.msra.mxu0 0
    %1591 = vmatprep.subr.bf16.mxu0 0
    %1592 = vmatpush1.bf16.msra.mxu0 0
    %1593 = vmatprep.subr.bf16.mxu0 0
    %1594 = vmatpush1.bf16.msra.mxu0 0
    %1595 = vmatprep.mubr.bf16.mxu0 0
    %1596 = vmatmul.mubr.bf16.gmra.mrb[0].mxu0 %v1274
    %v1597 = vpop.f32.mrb[0].mxu0
    %v1598 = vadd.f32 %v1557, %v1597
    %v1599 = vpop.f32.mrb[0].mxu0
    %v1600 = vadd.f32 %v1559, %v1599
    %v1601 = vpop.f32.mrb[0].mxu0
    %v1602 = vpop.f32.mrb[0].mxu0
    %1603 = vdwg.mxu0
    %v1604 = vmax.f32 %v1434, 0.0
    %v1605 = vmax.f32 %v1436, 0.0
    %v1606 = vmax.f32 %v1598, 0.0
    %v1607 = vmax.f32 %v1600, 0.0
    %v1608 = vpack.c.bf16 %v1604, %v1604
    %v1609 = vpack.c.bf16 %v1605, %v1605
    %v1610 = vpack.c.bf16 %v1606, %v1606
    %v1611 = vpack.c.bf16 %v1607, %v1607
    %v1612 = vld [vmem:[#allocation6] sm:$0xf]
    %v1613 = vld [vmem:[#allocation6 + $0x4] sm:$0xf]
    %v1614 = vld [vmem:[#allocation6 + $0x8] sm:$0xf]
    %v1615 = vld [vmem:[#allocation6 + $0xc] sm:$0xf]
    %v1616 = vld [vmem:[#allocation6 + $0x10] sm:$0xf]
    %v1617 = vld [vmem:[#allocation6 + $0x14] sm:$0xf]
    %v1618 = vld [vmem:[#allocation6 + $0x18] sm:$0xf]
    %v1619 = vld [vmem:[#allocation6 + $0x1c] sm:$0xf]
    %v1620 = vld [vmem:[#allocation6 + $0x20] sm:$0xf]
    %v1621 = vld [vmem:[#allocation6 + $0x24] sm:$0xf]
    %v1622 = vld [vmem:[#allocation6 + $0x28] sm:$0xf]
    %v1623 = vld [vmem:[#allocation6 + $0x2c] sm:$0xf]
    %v1624 = vld [vmem:[#allocation6 + $0x30] sm:$0xf]
    %v1625 = vld [vmem:[#allocation6 + $0x34] sm:$0xf]
    %v1626 = vld [vmem:[#allocation6 + $0x38] sm:$0xf]
    %v1627 = vld [vmem:[#allocation6 + $0x3c] sm:$0xf]
    %v1628 = vld [vmem:[#allocation6 + $0x40] sm:$0xf]
    %v1629 = vld [vmem:[#allocation6 + $0x44] sm:$0xf]
    %v1630 = vld [vmem:[#allocation6 + $0x48] sm:$0xf]
    %v1631 = vld [vmem:[#allocation6 + $0x4c] sm:$0xf]
    %v1632 = vld [vmem:[#allocation6 + $0x50] sm:$0xf]
    %v1633 = vld [vmem:[#allocation6 + $0x54] sm:$0xf]
    %v1634 = vld [vmem:[#allocation6 + $0x58] sm:$0xf]
    %v1635 = vld [vmem:[#allocation6 + $0x5c] sm:$0xf]
    %v1636 = vld [vmem:[#allocation6 + $0x60] sm:$0xf]
    %v1637 = vld [vmem:[#allocation6 + $0x64] sm:$0xf]
    %v1638 = vld [vmem:[#allocation6 + $0x68] sm:$0xf]
    %v1639 = vld [vmem:[#allocation6 + $0x6c] sm:$0xf]
    %v1640 = vld [vmem:[#allocation6 + $0x70] sm:$0xf]
    %v1641 = vld [vmem:[#allocation6 + $0x74] sm:$0xf]
    %v1642 = vld [vmem:[#allocation6 + $0x78] sm:$0xf]
    %v1643 = vld [vmem:[#allocation6 + $0x7c] sm:$0xf]
    %v1644 = vld [vmem:[#allocation6 + $0x80] sm:$0xf]
    %v1645 = vld [vmem:[#allocation6 + $0x84] sm:$0xf]
    %v1646 = vld [vmem:[#allocation6 + $0x88] sm:$0xf]
    %v1647 = vld [vmem:[#allocation6 + $0x8c] sm:$0xf]
    %v1648 = vld [vmem:[#allocation6 + $0x90] sm:$0xf]
    %v1649 = vld [vmem:[#allocation6 + $0x94] sm:$0xf]
    %v1650 = vld [vmem:[#allocation6 + $0x98] sm:$0xf]
    %v1651 = vld [vmem:[#allocation6 + $0x9c] sm:$0xf]
    %v1652 = vld [vmem:[#allocation6 + $0xa0] sm:$0xf]
    %v1653 = vld [vmem:[#allocation6 + $0xa4] sm:$0xf]
    %v1654 = vld [vmem:[#allocation6 + $0xa8] sm:$0xf]
    %v1655 = vld [vmem:[#allocation6 + $0xac] sm:$0xf]
    %v1656 = vld [vmem:[#allocation6 + $0xb0] sm:$0xf]
    %v1657 = vld [vmem:[#allocation6 + $0xb4] sm:$0xf]
    %v1658 = vld [vmem:[#allocation6 + $0xb8] sm:$0xf]
    %v1659 = vld [vmem:[#allocation6 + $0xbc] sm:$0xf]
    %v1660 = vld [vmem:[#allocation6 + $0xc0] sm:$0xf]
    %v1661 = vld [vmem:[#allocation6 + $0xc4] sm:$0xf]
    %v1662 = vld [vmem:[#allocation6 + $0xc8] sm:$0xf]
    %v1663 = vld [vmem:[#allocation6 + $0xcc] sm:$0xf]
    %v1664 = vld [vmem:[#allocation6 + $0xd0] sm:$0xf]
    %v1665 = vld [vmem:[#allocation6 + $0xd4] sm:$0xf]
    %v1666 = vld [vmem:[#allocation6 + $0xd8] sm:$0xf]
    %v1667 = vld [vmem:[#allocation6 + $0xdc] sm:$0xf]
    %v1668 = vld [vmem:[#allocation6 + $0xe0] sm:$0xf]
    %v1669 = vld [vmem:[#allocation6 + $0xe4] sm:$0xf]
    %v1670 = vld [vmem:[#allocation6 + $0xe8] sm:$0xf]
    %v1671 = vld [vmem:[#allocation6 + $0xec] sm:$0xf]
    %v1672 = vld [vmem:[#allocation6 + $0xf0] sm:$0xf]
    %v1673 = vld [vmem:[#allocation6 + $0xf4] sm:$0xf]
    %v1674 = vld [vmem:[#allocation6 + $0xf8] sm:$0xf]
    %v1675 = vld [vmem:[#allocation6 + $0xfc] sm:$0xf]
    %v1676 = vld [vmem:[%s4] sm:$0x1]
    %v1678 = vlaneseq
    %v1679 = vshrl.u32 %v1678, 7
    %v1680 = vsub.s32 0, %v1679
    %v1681 = vrot.slane %v1676, %v1680
    %v1747 = vunpack.c.l.b16 %v1612
    %v1748 = vunpack.c.l.b16 %v1613
    %v1749 = vunpack.c.l.b16 %v1614
    %v1750 = vunpack.c.l.b16 %v1615
    %v1751 = vunpack.c.l.b16 %v1616
    %v1752 = vunpack.c.l.b16 %v1617
    %v1753 = vunpack.c.l.b16 %v1618
    %v1754 = vunpack.c.l.b16 %v1619
    %v1755 = vunpack.c.l.b16 %v1620
    %v1756 = vunpack.c.l.b16 %v1621
    %v1757 = vunpack.c.l.b16 %v1622
    %v1758 = vunpack.c.l.b16 %v1623
    %v1759 = vunpack.c.l.b16 %v1624
    %v1760 = vunpack.c.l.b16 %v1625
    %v1761 = vunpack.c.l.b16 %v1626
    %v1762 = vunpack.c.l.b16 %v1627
    %v1763 = vunpack.c.l.b16 %v1628
    %v1764 = vunpack.c.l.b16 %v1629
    %v1765 = vunpack.c.l.b16 %v1630
    %v1766 = vunpack.c.l.b16 %v1631
    %v1767 = vunpack.c.l.b16 %v1632
    %v1768 = vunpack.c.l.b16 %v1633
    %v1769 = vunpack.c.l.b16 %v1634
    %v1770 = vunpack.c.l.b16 %v1635
    %v1771 = vunpack.c.l.b16 %v1636
    %v1772 = vunpack.c.l.b16 %v1637
    %v1773 = vunpack.c.l.b16 %v1638
    %v1774 = vunpack.c.l.b16 %v1639
    %v1775 = vunpack.c.l.b16 %v1640
    %v1776 = vunpack.c.l.b16 %v1641
    %v1777 = vunpack.c.l.b16 %v1642
    %v1778 = vunpack.c.l.b16 %v1643
    %v1779 = vunpack.c.l.b16 %v1644
    %v1780 = vunpack.c.l.b16 %v1645
    %v1781 = vunpack.c.l.b16 %v1646
    %v1782 = vunpack.c.l.b16 %v1647
    %v1783 = vunpack.c.l.b16 %v1648
    %v1784 = vunpack.c.l.b16 %v1649
    %v1785 = vunpack.c.l.b16 %v1650
    %v1786 = vunpack.c.l.b16 %v1651
    %v1787 = vunpack.c.l.b16 %v1652
    %v1788 = vunpack.c.l.b16 %v1653
    %v1789 = vunpack.c.l.b16 %v1654
    %v1790 = vunpack.c.l.b16 %v1655
    %v1791 = vunpack.c.l.b16 %v1656
    %v1792 = vunpack.c.l.b16 %v1657
    %v1793 = vunpack.c.l.b16 %v1658
    %v1794 = vunpack.c.l.b16 %v1659
    %v1795 = vunpack.c.l.b16 %v1660
    %v1796 = vunpack.c.l.b16 %v1661
    %v1797 = vunpack.c.l.b16 %v1662
    %v1798 = vunpack.c.l.b16 %v1663
    %v1799 = vunpack.c.l.b16 %v1664
    %v1800 = vunpack.c.l.b16 %v1665
    %v1801 = vunpack.c.l.b16 %v1666
    %v1802 = vunpack.c.l.b16 %v1667
    %v1803 = vunpack.c.l.b16 %v1668
    %v1804 = vunpack.c.l.b16 %v1669
    %v1805 = vunpack.c.l.b16 %v1670
    %v1806 = vunpack.c.l.b16 %v1671
    %v1807 = vunpack.c.l.b16 %v1672
    %v1808 = vunpack.c.l.b16 %v1673
    %v1809 = vunpack.c.l.b16 %v1674
    %v1810 = vunpack.c.l.b16 %v1675
    %v1811 = vpack.c.b16 %v1748, %v1747
    %v1812 = vpack.c.b16 %v1750, %v1749
    %v1813 = vpack.c.b16 %v1752, %v1751
    %v1814 = vpack.c.b16 %v1754, %v1753
    %v1815 = vpack.c.b16 %v1756, %v1755
    %v1816 = vpack.c.b16 %v1758, %v1757
    %v1817 = vpack.c.b16 %v1760, %v1759
    %v1818 = vpack.c.b16 %v1762, %v1761
    %v1819 = vpack.c.b16 %v1764, %v1763
    %v1820 = vpack.c.b16 %v1766, %v1765
    %v1821 = vpack.c.b16 %v1768, %v1767
    %v1822 = vpack.c.b16 %v1770, %v1769
    %v1823 = vpack.c.b16 %v1772, %v1771
    %v1824 = vpack.c.b16 %v1774, %v1773
    %v1825 = vpack.c.b16 %v1776, %v1775
    %v1826 = vpack.c.b16 %v1778, %v1777
    %v1827 = vpack.c.b16 %v1780, %v1779
    %v1828 = vpack.c.b16 %v1782, %v1781
    %v1829 = vpack.c.b16 %v1784, %v1783
    %v1830 = vpack.c.b16 %v1786, %v1785
    %v1831 = vpack.c.b16 %v1788, %v1787
    %v1832 = vpack.c.b16 %v1790, %v1789
    %v1833 = vpack.c.b16 %v1792, %v1791
    %v1834 = vpack.c.b16 %v1794, %v1793
    %v1835 = vpack.c.b16 %v1796, %v1795
    %v1836 = vpack.c.b16 %v1798, %v1797
    %v1837 = vpack.c.b16 %v1800, %v1799
    %v1838 = vpack.c.b16 %v1802, %v1801
    %v1839 = vpack.c.b16 %v1804, %v1803
    %v1840 = vpack.c.b16 %v1806, %v1805
    %v1841 = vpack.c.b16 %v1808, %v1807
    %v1842 = vpack.c.b16 %v1810, %v1809
    %1875 = vmatprep.subr.bf16.mxu0 0
    %1876 = vmatpush1.bf16.msra.mxu0 %v1811
    %1877 = vmatprep.subr.bf16.mxu0 0
    %1878 = vmatpush1.bf16.msra.mxu0 %v1812
    %1879 = vmatprep.subr.bf16.mxu0 0
    %1880 = vmatpush1.bf16.msra.mxu0 %v1813
    %1881 = vmatprep.subr.bf16.mxu0 0
    %1882 = vmatpush1.bf16.msra.mxu0 %v1814
    %1883 = vmatprep.subr.bf16.mxu0 0
    %1884 = vmatpush1.bf16.msra.mxu0 %v1815
    %1885 = vmatprep.subr.bf16.mxu0 0
    %1886 = vmatpush1.bf16.msra.mxu0 %v1816
    %1887 = vmatprep.subr.bf16.mxu0 0
    %1888 = vmatpush1.bf16.msra.mxu0 %v1817
    %1889 = vmatprep.subr.bf16.mxu0 0
    %1890 = vmatpush1.bf16.msra.mxu0 %v1818
    %1891 = vmatprep.subr.bf16.mxu0 0
    %1892 = vmatpush1.bf16.msra.mxu0 %v1819
    %1893 = vmatprep.subr.bf16.mxu0 0
    %1894 = vmatpush1.bf16.msra.mxu0 %v1820
    %1895 = vmatprep.subr.bf16.mxu0 0
    %1896 = vmatpush1.bf16.msra.mxu0 %v1821
    %1897 = vmatprep.subr.bf16.mxu0 0
    %1898 = vmatpush1.bf16.msra.mxu0 %v1822
    %1899 = vmatprep.subr.bf16.mxu0 0
    %1900 = vmatpush1.bf16.msra.mxu0 %v1823
    %1901 = vmatprep.subr.bf16.mxu0 0
    %1902 = vmatpush1.bf16.msra.mxu0 %v1824
    %1903 = vmatprep.subr.bf16.mxu0 0
    %1904 = vmatpush1.bf16.msra.mxu0 %v1825
    %1905 = vmatprep.subr.bf16.mxu0 0
    %1906 = vmatpush1.bf16.msra.mxu0 %v1826
    %1907 = vmatprep.mubr.bf16.mxu0 %v1609
    %1908 = vmatmul.mubr.bf16.gmra.mrb[0].mxu0 %v1608
    %v1909 = vpop.f32.mrb[0].mxu0
    %v1910 = vadd.f32 %v1681, %v1909
    %v1911 = vpop.f32.mrb[0].mxu0
    %v1912 = vpop.f32.mrb[0].mxu0
    %v1913 = vpop.f32.mrb[0].mxu0
    %1914 = vdwg.mxu0
    %1915 = vmatprep.subr.bf16.mxu0 0
    %1916 = vmatpush1.bf16.msra.mxu0 %v1827
    %1917 = vmatprep.subr.bf16.mxu0 0
    %1918 = vmatpush1.bf16.msra.mxu0 %v1828
    %1919 = vmatprep.subr.bf16.mxu0 0
    %1920 = vmatpush1.bf16.msra.mxu0 %v1829
    %1921 = vmatprep.subr.bf16.mxu0 0
    %1922 = vmatpush1.bf16.msra.mxu0 %v1830
    %1923 = vmatprep.subr.bf16.mxu0 0
    %1924 = vmatpush1.bf16.msra.mxu0 %v1831
    %1925 = vmatprep.subr.bf16.mxu0 0
    %1926 = vmatpush1.bf16.msra.mxu0 %v1832
    %1927 = vmatprep.subr.bf16.mxu0 0
    %1928 = vmatpush1.bf16.msra.mxu0 %v1833
    %1929 = vmatprep.subr.bf16.mxu0 0
    %1930 = vmatpush1.bf16.msra.mxu0 %v1834
    %1931 = vmatprep.subr.bf16.mxu0 0
    %1932 = vmatpush1.bf16.msra.mxu0 %v1835
    %1933 = vmatprep.subr.bf16.mxu0 0
    %1934 = vmatpush1.bf16.msra.mxu0 %v1836
    %1935 = vmatprep.subr.bf16.mxu0 0
    %1936 = vmatpush1.bf16.msra.mxu0 %v1837
    %1937 = vmatprep.subr.bf16.mxu0 0
    %1938 = vmatpush1.bf16.msra.mxu0 %v1838
    %1939 = vmatprep.subr.bf16.mxu0 0
    %1940 = vmatpush1.bf16.msra.mxu0 %v1839
    %1941 = vmatprep.subr.bf16.mxu0 0
    %1942 = vmatpush1.bf16.msra.mxu0 %v1840
    %1943 = vmatprep.subr.bf16.mxu0 0
    %1944 = vmatpush1.bf16.msra.mxu0 %v1841
    %1945 = vmatprep.subr.bf16.mxu0 0
    %1946 = vmatpush1.bf16.msra.mxu0 %v1842
    %1947 = vmatprep.mubr.bf16.mxu0 %v1611
    %1948 = vmatmul.mubr.bf16.gmra.mrb[0].mxu0 %v1610
    %v1949 = vpop.f32.mrb[0].mxu0
    %v1950 = vadd.f32 %v1910, %v1949
    %v1951 = vpop.f32.mrb[0].mxu0
    %v1952 = vpop.f32.mrb[0].mxu0
    %v1953 = vpop.f32.mrb[0].mxu0
    %1954 = vdwg.mxu0
    %v1955 = vpack.c.bf16 %v1950, %v1950
    %1956 = vst [vmem:[%s5] sm:$0xf] %v1955
    // Predicated region
    $region34: #{neural_net_forward.1} parent=1 // pred_check
      _
    $region35: #{neural_net_forward.1} parent=1 // pred_check_branch
      %1958 = sbr.rel (0) target = $region37
    $region36: #{neural_net_forward.1} parent=1 // pred_region
      _
    $region37: #{neural_net_forward.1} parent=1 // pred_fallthru
      _
    // Predicated region
    $region38: #{neural_net_forward.1} parent=1 // pred_check
      _
    $region39: #{neural_net_forward.1} parent=1 // pred_check_branch
      %1960 = sbr.rel (0) target = $region41
    $region40: #{neural_net_forward.1} parent=1 // pred_region
      _
    $region41: #{neural_net_forward.1} parent=1 // pred_fallthru
      _
    %1961 = vsyncpa [#allocation3], 1
    %1962 = vsyncpa [#allocation5], 1

</llo_original>
